<compile_context>
chip_gen: v7x
topology: tpu7x:2x2x1
jax: 0.10.0
libtpu: 0.0.40
codegen_flags: <defaults>
</compile_context>

<pallas_src>
import jax
import jax.numpy as jnp
from jax import lax
from jax.experimental import pallas as pl
from jax.experimental.pallas import tpu as pltpu


# ----------------------------- pass 1 kernel ---------------------------------
def _gcn_csum_kernel(adj_ref, xw_ref, bias_ref, slope_ref, ohm_ref,
                     h_ref, csum_ref):
    """One adjacency row tile: GCN for both views + partial cluster means.

    adj_ref  : (tm, Np)     adjacency row tile (streamed, matmul dtype)
    xw_ref   : (Np, 2*n_h)  [x1 @ W | x2 @ W] (resident, single-buffered)
    bias_ref : (1, 2*n_h)   [b_gcn | b_gcn]               f32
    slope_ref: (1, 2*n_h)   [prelu | prelu]               f32
    ohm_ref  : (Kp, tm)     one-hot / cluster-count column tile, f32
    h_ref    : (tm, 2*n_h)  f32 output tile [h1 | h2]
    csum_ref : (Kp, 2*n_h)  f32 per-tile partial cluster means
    """
    z = jnp.dot(adj_ref[...], xw_ref[...], preferred_element_type=jnp.float32)
    h_pre = z + bias_ref[...]
    h = jnp.where(h_pre > 0, h_pre, slope_ref[...] * h_pre)          # PReLU
    h_ref[...] = h
    # ohm rows are pre-scaled by 1/|cluster|, so summing the per-tile partials
    # over the grid gives per-cluster means of [h1 | h2].
    csum_ref[...] = jnp.dot(ohm_ref[...], h, preferred_element_type=jnp.float32)


# ----------------------------- pass 2 kernel ---------------------------------
def _score_kernel(h_ref, ohm_ref, ac1_ref, ac2_ref, bd_ref, out_ref):
    """Tiled bilinear scoring, lane-dense (2, tm) output block.

    h_ref   : (tm, 2*n_h)  [h1 | h2] tile (f32)
    ohm_ref : (Kp, tm)     cluster membership tile (>0 where member)
    ac1_ref : (Kp, 2*n_h)  [W @ c_k | 0]  (selects the h1 half)
    ac2_ref : (Kp, 2*n_h)  [0 | W @ c_k]  (selects the h2 half)
    bd_ref  : (1, 1)       bilinear bias (SMEM scalar)
    out_ref : (2, tm)      [scores(h1); scores(h2)]
    """
    h = h_ref[...]
    sel = (ohm_ref[...] > 0).astype(jnp.float32)                      # (Kp, tm) 0/1
    s1 = lax.dot_general(ac1_ref[...], h, (((1,), (1,)), ((), ())),
                         preferred_element_type=jnp.float32)          # (Kp, tm)
    s2 = lax.dot_general(ac2_ref[...], h, (((1,), (1,)), ((), ())),
                         preferred_element_type=jnp.float32)          # (Kp, tm)
    b = bd_ref[0, 0]
    out_ref[0:1, :] = jnp.sum(sel * s1, axis=0, keepdims=True) + b
    out_ref[1:2, :] = jnp.sum(sel * s2, axis=0, keepdims=True) + b


def _choose_row_tile(n, max_block_rows):
    """Pad N to a 128-multiple; pick the largest 128-multiple tile that divides it."""
    n_pad = ((n + 127) // 128) * 128
    tiles128 = n_pad // 128
    tm = 128
    for m in range(2, tiles128 + 1):
        cand = 128 * m
        if tiles128 % m == 0 and cand <= max_block_rows:
            tm = cand
    return tm, n_pad


# ------------------------------ UCDMI forward --------------------------------
def ucdmi_forward(params, cc_label, seq1, seq2, adj, sparse=False, msk=None,
                  samp_bias1=None, samp_bias2=None, *,
                  matmul_dtype=jnp.bfloat16, block_rows=256,
                  vmem_limit_bytes=64 * 1024 * 1024):
    # seq1, seq2: (1, N, n_in)   adj: (1, N, N)   cc_label: list of node-index lists
    assert not sparse, "dense adjacency path only"
    assert msk is None and samp_bias1 is None and samp_bias2 is None
    x1, x2, A = seq1[0], seq2[0], adj[0]
    N, _ = x1.shape
    n_h = params["w_gcn"].shape[1]
    hp = lax.Precision.HIGHEST

    tm, n_pad = _choose_row_tile(N, max(128, block_rows))
    num_tiles = n_pad // tm

    # X @ W hoisted out of the kernel: feed XW (Np, 2*n_h) so the N^2-cost
    # matmul is one MXU pass per adj tile and (N, 2*n_in) never lives in VMEM.
    xw = jnp.concatenate([jnp.dot(x1, params["w_gcn"], precision=hp),
                          jnp.dot(x2, params["w_gcn"], precision=hp)], axis=1)
    xw_p = jnp.zeros((n_pad, 2 * n_h), jnp.float32).at[:N].set(xw)
    xw_p = xw_p.astype(matmul_dtype)
    adj_p = jnp.zeros((n_pad, n_pad), jnp.float32).at[:N, :N].set(A)
    adj_p = adj_p.astype(matmul_dtype)
    # TODO(synk): adjacency-bandwidth-bound configs could further quantize adj
    # (int8 on v5e/v6e, fp8 on v7x) with a per-row scale.

    bias2 = jnp.concatenate([params["b_gcn"]] * 2, axis=1).astype(jnp.float32)
    slope2 = jnp.concatenate([params["prelu"]] * 2, axis=1).astype(jnp.float32)

    # Cluster membership, pre-scaled by 1/count (rows sum to 1 per cluster);
    # K padded to a sublane multiple, node axis padded to n_pad.
    # TODO(synk): the PyTorch reference leaves nodes absent from cc_label
    # uninitialized (torch.empty); here they score == disc bias and are
    # excluded from every cluster mean.
    K = len(cc_label)
    Kp = max(8, ((K + 7) // 8) * 8)
    cid = jnp.full((N,), -1, jnp.int32)
    for i, idxs in enumerate(cc_label):
        cid = cid.at[jnp.asarray(idxs, jnp.int32)].set(i)
    oh_kn = jax.nn.one_hot(cid, Kp, dtype=jnp.float32).T               # (Kp, N)
    counts = jnp.maximum(jnp.sum(oh_kn, axis=1, keepdims=True), 1.0)   # empty-cluster guard
    ohm = jnp.zeros((Kp, n_pad), jnp.float32).at[:, :N].set(oh_kn / counts)

    bd = params["disc_b"].reshape(1, 1).astype(jnp.float32)
    w_disc_t = params["disc_W"].T.astype(jnp.float32)

    def run(single_buffer_invariants):
        def inv_spec(shape):
            if single_buffer_invariants:
                return pl.BlockSpec(shape, lambda i: (0, 0),
                                    pipeline_mode=pl.Buffered(1))
            return pl.BlockSpec(shape, lambda i: (0, 0))

        cparams = pltpu.CompilerParams(
            dimension_semantics=("parallel",),          # no cross-tile carries
            vmem_limit_bytes=vmem_limit_bytes,
        )

        # ---- pass 1: GCN (both views) + per-tile partial cluster means ------
        h_pad, csum_parts = pl.pallas_call(
            _gcn_csum_kernel,
            out_shape=(jax.ShapeDtypeStruct((n_pad, 2 * n_h), jnp.float32),
                       jax.ShapeDtypeStruct((num_tiles * Kp, 2 * n_h),
                                            jnp.float32)),
            grid=(num_tiles,),
            in_specs=[
                pl.BlockSpec((tm, n_pad), lambda i: (i, 0)),   # adj tile (streamed)
                inv_spec((n_pad, 2 * n_h)),                    # XW (resident)
                inv_spec((1, 2 * n_h)),                        # gcn bias
                inv_spec((1, 2 * n_h)),                        # prelu slope
                pl.BlockSpec((Kp, tm), lambda i: (0, i)),      # ohm column tile
            ],
            out_specs=(pl.BlockSpec((tm, 2 * n_h), lambda i: (i, 0)),
                       pl.BlockSpec((Kp, 2 * n_h), lambda i: (i, 0))),
            compiler_params=cparams,
        )(adj_p, xw_p, bias2, slope2, ohm)

        # ---- tiny glue on (Kp, n_h) arrays (XLA): cluster summaries + W @ c -
        cmean = csum_parts.reshape(num_tiles, Kp, 2 * n_h).sum(axis=0)
        c = jax.nn.sigmoid(cmean[:, :n_h])                     # summaries from h1
        ac = jnp.dot(c, w_disc_t, precision=hp)                # rows = W @ c_k
        zeros = jnp.zeros_like(ac)
        ac1m = jnp.concatenate([ac, zeros], axis=1)            # picks the h1 half
        ac2m = jnp.concatenate([zeros, ac], axis=1)            # picks the h2 half

        # ---- pass 2: tiled bilinear scoring, lane-dense (2, Np) output ------
        out2 = pl.pallas_call(
            _score_kernel,
            out_shape=jax.ShapeDtypeStruct((2, n_pad), jnp.float32),
            grid=(num_tiles,),
            in_specs=[
                pl.BlockSpec((tm, 2 * n_h), lambda i: (i, 0)),  # h tile
                pl.BlockSpec((Kp, tm), lambda i: (0, i)),       # membership tile
                inv_spec((Kp, 2 * n_h)),                        # [ac | 0]
                inv_spec((Kp, 2 * n_h)),                        # [0 | ac]
                pl.BlockSpec(memory_space=pltpu.MemorySpace.SMEM),  # disc bias
            ],
            out_specs=pl.BlockSpec((2, tm), lambda i: (0, i)),
            compiler_params=cparams,
        )(h_pad, ohm, ac1m, ac2m, bd)
        return out2

    try:
        out2 = run(single_buffer_invariants=True)
    except Exception:
        # Fallback for jax/Mosaic versions that reject pl.Buffered(1) on
        # grid-invariant operands; everything else is unchanged.
        out2 = run(single_buffer_invariants=False)

    return out2[:, :N].reshape(1, 2 * N)                       # [ret_1 | ret_2]


# -------------------------- pure-JAX reference --------------------------------
def ucdmi_reference(params, cc_label, seq1, seq2, adj):
    x1, x2, A = seq1[0], seq2[0], adj[0]
    N = x1.shape[0]
    hp = lax.Precision.HIGHEST

    def gcn(x):
        h = jnp.dot(A, jnp.dot(x, params["w_gcn"], precision=hp),
                    precision=hp) + params["b_gcn"]
        return jnp.where(h > 0, h, params["prelu"] * h)

    h1, h2 = gcn(x1), gcn(x2)
    ret1 = jnp.zeros((N,), jnp.float32)
    ret2 = jnp.zeros((N,), jnp.float32)
    for idxs in cc_label:
        idxs = jnp.asarray(idxs, jnp.int32)
        h11, h22 = h1[idxs], h2[idxs]
        c = jax.nn.sigmoid(jnp.mean(h11, axis=0))
        ac = jnp.dot(params["disc_W"], c, precision=hp)
        ret1 = ret1.at[idxs].set(jnp.dot(h11, ac, precision=hp) + params["disc_b"][0, 0])
        ret2 = ret2.at[idxs].set(jnp.dot(h22, ac, precision=hp) + params["disc_b"][0, 0])
    return jnp.concatenate([ret1, ret2]).reshape(1, 2 * N)


# ------------------------------------ main ------------------------------------
def _make_case(key, N, n_in, n_h, K):
    ks = jax.random.split(key, 6)
    params = {
        "w_gcn": jax.random.normal(ks[0], (n_in, n_h), jnp.float32)
                 * jnp.sqrt(2.0 / (n_in + n_h)),
        "b_gcn": jnp.zeros((1, n_h), jnp.float32),
        "prelu": jnp.full((1, n_h), 0.25, jnp.float32),          # nn.PReLU() default
        "disc_W": jax.random.normal(ks[1], (n_h, n_h), jnp.float32)
                  * (1.0 / jnp.sqrt(n_h)),
        "disc_b": jax.random.normal(ks[2], (1, 1), jnp.float32) * 0.1,
    }
    # Parameters C (2708,7), E (7,128), I (eye 7) from __init__ are unused in forward.
    seq1 = jax.random.normal(ks[3], (1, N, n_in), jnp.float32)
    seq2 = jax.random.normal(ks[4], (1, N, n_in), jnp.float32)
    raw = (jax.random.uniform(ks[5], (N, N)) < 0.05).astype(jnp.float32) + jnp.eye(N)
    adj = (raw / jnp.sum(raw, axis=1, keepdims=True))[None]      # (1, N, N)
    # Interleaved (uneven when K does not divide N) partition into K clusters.
    cc_label = [list(range(i, N, K)) for i in range(K)]
    return params, cc_label, seq1, seq2, adj


if __name__ == "__main__":
    key = jax.random.PRNGKey(0)
    k_a, k_b = jax.random.split(key)

    # Config A: N=256 -> two 128-row tiles, K=7 (Kp=8).
    params_a, cc_a, s1_a, s2_a, adj_a = _make_case(k_a, N=256, n_in=16, n_h=32, K=7)
    ref_a = ucdmi_reference(params_a, cc_a, s1_a, s2_a, adj_a)

    out_f32 = jax.block_until_ready(
        ucdmi_forward(params_a, cc_a, s1_a, s2_a, adj_a, False, None, None, None,
                      matmul_dtype=jnp.float32, block_rows=128))
    assert out_f32.shape == (1, 512), out_f32.shape
    assert jnp.all(jnp.isfinite(out_f32))
    assert jnp.allclose(out_f32, ref_a, rtol=2e-3, atol=2e-3), \
        float(jnp.max(jnp.abs(out_f32 - ref_a)))

    out_bf16 = jax.block_until_ready(
        ucdmi_forward(params_a, cc_a, s1_a, s2_a, adj_a, False, None, None, None,
                      matmul_dtype=jnp.bfloat16, block_rows=128))
    assert jnp.all(jnp.isfinite(out_bf16))
    # bf16 matmul inputs with f32 accumulation: relaxed tolerance vs f32 reference.
    assert jnp.allclose(out_bf16, ref_a, rtol=5e-2, atol=5e-2), \
        float(jnp.max(jnp.abs(out_bf16 - ref_a)))

    # Config B: N=200 is not a multiple of the tile -> exercises host-side
    # padding to Np=256 (two 128-row tiles), and n_in > n_h.
    params_b, cc_b, s1_b, s2_b, adj_b = _make_case(k_b, N=200, n_in=96, n_h=32, K=4)
    ref_b = ucdmi_reference(params_b, cc_b, s1_b, s2_b, adj_b)
    out_b = jax.block_until_ready(
        ucdmi_forward(params_b, cc_b, s1_b, s2_b, adj_b, False, None, None, None,
                      matmul_dtype=jnp.float32, block_rows=128))
    assert out_b.shape == (1, 400), out_b.shape
    assert jnp.all(jnp.isfinite(out_b))
    assert jnp.allclose(out_b, ref_b, rtol=2e-3, atol=2e-3), \
        float(jnp.max(jnp.abs(out_b - ref_b)))

    print("KERNEL_OK")
</pallas_src>

<mosaic_0001>
module attributes {stable_mosaic.version = 11 : i64} {
  func.func @_gcn_csum_kernel(%arg0: i32, %arg1: memref<128x256xf32, #tpu.memory_space<vmem>>, %arg2: memref<256x64xf32, #tpu.memory_space<vmem>>, %arg3: memref<1x64xf32, #tpu.memory_space<vmem>>, %arg4: memref<1x64xf32, #tpu.memory_space<vmem>>, %arg5: memref<8x128xf32, #tpu.memory_space<vmem>>, %arg6: memref<128x64xf32, #tpu.memory_space<vmem>>, %arg7: memref<8x64xf32, #tpu.memory_space<vmem>>) attributes {dimension_semantics = [#tpu.dimension_semantics<parallel>], iteration_bounds = array<i64: 2>, scalar_prefetch = 0 : i64, scratch_operands = 0 : i64, tpu.core_type = #tpu.core_type<tc>, window_params = [{transform_indices = @transform_0, window_bounds = array<i64: 128, 256>}, {pipeline_mode = #tpu.pipeline_mode<synchronous>, transform_indices = @transform_1, window_bounds = array<i64: 256, 64>}, {pipeline_mode = #tpu.pipeline_mode<synchronous>, transform_indices = @transform_2, window_bounds = array<i64: 1, 64>}, {pipeline_mode = #tpu.pipeline_mode<synchronous>, transform_indices = @transform_3, window_bounds = array<i64: 1, 64>}, {transform_indices = @transform_4, window_bounds = array<i64: 8, 128>}, {transform_indices = @transform_5, window_bounds = array<i64: 128, 64>}, {transform_indices = @transform_6, window_bounds = array<i64: 8, 64>}]} {
    %c0 = arith.constant 0 : index
    %c0_0 = arith.constant 0 : index
    %0 = vector.load %arg1[%c0, %c0_0] : memref<128x256xf32, #tpu.memory_space<vmem>>, vector<128x256xf32>
    %c0_1 = arith.constant 0 : index
    %c0_2 = arith.constant 0 : index
    %1 = vector.load %arg2[%c0_1, %c0_2] : memref<256x64xf32, #tpu.memory_space<vmem>>, vector<256x64xf32>
    %cst = arith.constant dense<0.000000e+00> : vector<128x64xf32>
    %2 = tpu.matmul %0, %1, %cst {dimension_numbers = #tpu.dot_dimension_numbers<[1], [0], [0], [1], [0, 0, 1, 1], [], []>} : vector<128x256xf32>, vector<256x64xf32>, vector<128x64xf32> -> vector<128x64xf32>
    %c0_3 = arith.constant 0 : index
    %c0_4 = arith.constant 0 : index
    %3 = vector.load %arg3[%c0_3, %c0_4] : memref<1x64xf32, #tpu.memory_space<vmem>>, vector<1x64xf32>
    %4 = vector.broadcast %3 : vector<1x64xf32> to vector<128x64xf32>
    %5 = arith.addf %2, %4 : vector<128x64xf32>
    %cst_5 = arith.constant 0.000000e+00 : f32
    %6 = vector.broadcast %cst_5 : f32 to vector<128x64xf32>
    %7 = arith.cmpf ogt, %5, %6 : vector<128x64xf32>
    %c0_6 = arith.constant 0 : index
    %c0_7 = arith.constant 0 : index
    %8 = vector.load %arg4[%c0_6, %c0_7] : memref<1x64xf32, #tpu.memory_space<vmem>>, vector<1x64xf32>
    %9 = vector.broadcast %8 : vector<1x64xf32> to vector<128x64xf32>
    %10 = arith.mulf %9, %5 : vector<128x64xf32>
    %11 = arith.select %7, %5, %10 : vector<128x64xi1>, vector<128x64xf32>
    %c0_8 = arith.constant 0 : index
    %c0_9 = arith.constant 0 : index
    %12 = vector.load %arg6[%c0_8, %c0_9] : memref<128x64xf32, #tpu.memory_space<vmem>>, vector<128x64xf32>
    tpu.vector_store %arg6[%c0_8, %c0_9], %11 {strides = array<i32>} : memref<128x64xf32, #tpu.memory_space<vmem>>, vector<128x64xf32>,
    %c0_10 = arith.constant 0 : index
    %c0_11 = arith.constant 0 : index
    %13 = vector.load %arg5[%c0_10, %c0_11] : memref<8x128xf32, #tpu.memory_space<vmem>>, vector<8x128xf32>
    %cst_12 = arith.constant dense<0.000000e+00> : vector<8x64xf32>
    %14 = tpu.matmul %13, %11, %cst_12 {dimension_numbers = #tpu.dot_dimension_numbers<[1], [0], [0], [1], [0, 0, 1, 1], [], []>} : vector<8x128xf32>, vector<128x64xf32>, vector<8x64xf32> -> vector<8x64xf32>
    %c0_13 = arith.constant 0 : index
    %c0_14 = arith.constant 0 : index
    %15 = vector.load %arg7[%c0_13, %c0_14] : memref<8x64xf32, #tpu.memory_space<vmem>>, vector<8x64xf32>
    tpu.vector_store %arg7[%c0_13, %c0_14], %14 {strides = array<i32>} : memref<8x64xf32, #tpu.memory_space<vmem>>, vector<8x64xf32>,
    return
  }
  func.func @transform_0(%arg0: i32) -> (i32, i32) {
    %c0_i32 = arith.constant 0 : i32
    %c0_i32_0 = arith.constant 0 : i32
    return %arg0, %c0_i32 : i32, i32
  }
  func.func @transform_1(%arg0: i32) -> (i32, i32) {
    %c0_i32 = arith.constant 0 : i32
    %c0_i32_0 = arith.constant 0 : i32
    %c0_i32_1 = arith.constant 0 : i32
    return %c0_i32, %c0_i32_0 : i32, i32
  }
  func.func @transform_2(%arg0: i32) -> (i32, i32) {
    %c0_i32 = arith.constant 0 : i32
    %c0_i32_0 = arith.constant 0 : i32
    %c0_i32_1 = arith.constant 0 : i32
    return %c0_i32, %c0_i32_0 : i32, i32
  }
  func.func @transform_3(%arg0: i32) -> (i32, i32) {
    %c0_i32 = arith.constant 0 : i32
    %c0_i32_0 = arith.constant 0 : i32
    %c0_i32_1 = arith.constant 0 : i32
    return %c0_i32, %c0_i32_0 : i32, i32
  }
  func.func @transform_4(%arg0: i32) -> (i32, i32) {
    %c0_i32 = arith.constant 0 : i32
    %c0_i32_0 = arith.constant 0 : i32
    return %c0_i32, %arg0 : i32, i32
  }
  func.func @transform_5(%arg0: i32) -> (i32, i32) {
    %c0_i32 = arith.constant 0 : i32
    %c0_i32_0 = arith.constant 0 : i32
    return %arg0, %c0_i32 : i32, i32
  }
  func.func @transform_6(%arg0: i32) -> (i32, i32) {
    %c0_i32 = arith.constant 0 : i32
    %c0_i32_0 = arith.constant 0 : i32
    return %arg0, %c0_i32 : i32, i32
  }
}

module attributes {stable_mosaic.version = 11 : i64} {
  func.func @_gcn_csum_kernel(%arg0: i32, %arg1: memref<128x256xf32, #tpu.memory_space<vmem>>, %arg2: memref<256x64xf32, #tpu.memory_space<vmem>>, %arg3: memref<1x64xf32, #tpu.memory_space<vmem>>, %arg4: memref<1x64xf32, #tpu.memory_space<vmem>>, %arg5: memref<8x128xf32, #tpu.memory_space<vmem>>, %arg6: memref<128x64xf32, #tpu.memory_space<vmem>>, %arg7: memref<8x64xf32, #tpu.memory_space<vmem>>) attributes {dimension_semantics = [#tpu.dimension_semantics<parallel>], iteration_bounds = array<i64: 2>, scalar_prefetch = 0 : i64, scratch_operands = 0 : i64, tpu.core_type = #tpu.core_type<tc>, window_params = [{transform_indices = @transform_0, window_bounds = array<i64: 128, 256>}, {pipeline_mode = #tpu.pipeline_mode<synchronous>, transform_indices = @transform_1, window_bounds = array<i64: 256, 64>}, {pipeline_mode = #tpu.pipeline_mode<synchronous>, transform_indices = @transform_2, window_bounds = array<i64: 1, 64>}, {pipeline_mode = #tpu.pipeline_mode<synchronous>, transform_indices = @transform_3, window_bounds = array<i64: 1, 64>}, {transform_indices = @transform_4, window_bounds = array<i64: 8, 128>}, {transform_indices = @transform_5, window_bounds = array<i64: 128, 64>}, {transform_indices = @transform_6, window_bounds = array<i64: 8, 64>}]} {
    %c0 = arith.constant 0 : index
    %c0_0 = arith.constant 0 : index
    %0 = vector.load %arg1[%c0, %c0_0] : memref<128x256xf32, #tpu.memory_space<vmem>>, vector<128x256xf32>
    %c0_1 = arith.constant 0 : index
    %c0_2 = arith.constant 0 : index
    %1 = vector.load %arg2[%c0_1, %c0_2] : memref<256x64xf32, #tpu.memory_space<vmem>>, vector<256x64xf32>
    %cst = arith.constant dense<0.000000e+00> : vector<128x64xf32>
    %2 = tpu.matmul %0, %1, %cst {dimension_numbers = #tpu.dot_dimension_numbers<[1], [0], [0], [1], [0, 0, 1, 1], [], []>} : vector<128x256xf32>, vector<256x64xf32>, vector<128x64xf32> -> vector<128x64xf32>
    %c0_3 = arith.constant 0 : index
    %c0_4 = arith.constant 0 : index
    %3 = vector.load %arg3[%c0_3, %c0_4] : memref<1x64xf32, #tpu.memory_space<vmem>>, vector<1x64xf32>
    %4 = vector.broadcast %3 : vector<1x64xf32> to vector<128x64xf32>
    %5 = arith.addf %2, %4 : vector<128x64xf32>
    %cst_5 = arith.constant 0.000000e+00 : f32
    %6 = vector.broadcast %cst_5 : f32 to vector<128x64xf32>
    %7 = arith.cmpf ogt, %5, %6 : vector<128x64xf32>
    %c0_6 = arith.constant 0 : index
    %c0_7 = arith.constant 0 : index
    %8 = vector.load %arg4[%c0_6, %c0_7] : memref<1x64xf32, #tpu.memory_space<vmem>>, vector<1x64xf32>
    %9 = vector.broadcast %8 : vector<1x64xf32> to vector<128x64xf32>
    %10 = arith.mulf %9, %5 : vector<128x64xf32>
    %11 = arith.select %7, %5, %10 : vector<128x64xi1>, vector<128x64xf32>
    %c0_8 = arith.constant 0 : index
    %c0_9 = arith.constant 0 : index
    %12 = vector.load %arg6[%c0_8, %c0_9] : memref<128x64xf32, #tpu.memory_space<vmem>>, vector<128x64xf32>
    tpu.vector_store %arg6[%c0_8, %c0_9], %11 {strides = array<i32>} : memref<128x64xf32, #tpu.memory_space<vmem>>, vector<128x64xf32>,
    %c0_10 = arith.constant 0 : index
    %c0_11 = arith.constant 0 : index
    %13 = vector.load %arg5[%c0_10, %c0_11] : memref<8x128xf32, #tpu.memory_space<vmem>>, vector<8x128xf32>
    %cst_12 = arith.constant dense<0.000000e+00> : vector<8x64xf32>
    %14 = tpu.matmul %13, %11, %cst_12 {dimension_numbers = #tpu.dot_dimension_numbers<[1], [0], [0], [1], [0, 0, 1, 1], [], []>} : vector<8x128xf32>, vector<128x64xf32>, vector<8x64xf32> -> vector<8x64xf32>
    %c0_13 = arith.constant 0 : index
    %c0_14 = arith.constant 0 : index
    %15 = vector.load %arg7[%c0_13, %c0_14] : memref<8x64xf32, #tpu.memory_space<vmem>>, vector<8x64xf32>
    tpu.vector_store %arg7[%c0_13, %c0_14], %14 {strides = array<i32>} : memref<8x64xf32, #tpu.memory_space<vmem>>, vector<8x64xf32>,
    return
  }
  func.func @transform_0(%arg0: i32) -> (i32, i32) {
    %c0_i32 = arith.constant 0 : i32
    %c0_i32_0 = arith.constant 0 : i32
    return %arg0, %c0_i32 : i32, i32
  }
  func.func @transform_1(%arg0: i32) -> (i32, i32) {
    %c0_i32 = arith.constant 0 : i32
    %c0_i32_0 = arith.constant 0 : i32
    %c0_i32_1 = arith.constant 0 : i32
    return %c0_i32, %c0_i32_0 : i32, i32
  }
  func.func @transform_2(%arg0: i32) -> (i32, i32) {
    %c0_i32 = arith.constant 0 : i32
    %c0_i32_0 = arith.constant 0 : i32
    %c0_i32_1 = arith.constant 0 : i32
    return %c0_i32, %c0_i32_0 : i32, i32
  }
  func.func @transform_3(%arg0: i32) -> (i32, i32) {
    %c0_i32 = arith.constant 0 : i32
    %c0_i32_0 = arith.constant 0 : i32
    %c0_i32_1 = arith.constant 0 : i32
    return %c0_i32, %c0_i32_0 : i32, i32
  }
  func.func @transform_4(%arg0: i32) -> (i32, i32) {
    %c0_i32 = arith.constant 0 : i32
    %c0_i32_0 = arith.constant 0 : i32
    return %c0_i32, %arg0 : i32, i32
  }
  func.func @transform_5(%arg0: i32) -> (i32, i32) {
    %c0_i32 = arith.constant 0 : i32
    %c0_i32_0 = arith.constant 0 : i32
    return %arg0, %c0_i32 : i32, i32
  }
  func.func @transform_6(%arg0: i32) -> (i32, i32) {
    %c0_i32 = arith.constant 0 : i32
    %c0_i32_0 = arith.constant 0 : i32
    return %arg0, %c0_i32 : i32, i32
  }
}

</mosaic_0001>

<llo_original>
// kernel: tpu_custom_call.1
$region0: #{tpu_custom_call.1}
  #allocation0 [shape = 'u32[]', space=smem, size = 0x4, offset = 0x4, fixed_abs, tag = 'smem constant byte address 0x4 - core index']
  #allocation1 [shape = 'u32[144,128]{1,0:T(1,128)}', space=vmem, size = 0x12000, scoped, tag = 'internal scratch']
  %s0 = inlined_call_operand.hbm [shape: f32[256,256], index: 0, kind: input, shape index: {}]
  %s1 = inlined_call_operand.hbm [shape: f32[256,64], index: 1, kind: input, shape index: {}]
  %s2 = inlined_call_operand.hbm [shape: f32[1,64], index: 2, kind: input, shape index: {}]
  %s3 = inlined_call_operand.hbm [shape: f32[1,64], index: 3, kind: input, shape index: {}]
  %s4 = inlined_call_operand.hbm [shape: f32[8,256], index: 4, kind: input, shape index: {}]
  %s5 = inlined_call_operand.hbm [shape: f32[256,64], index: 5, kind: output, shape index: {0}]
  %s6 = inlined_call_operand.hbm [shape: f32[16,64], index: 6, kind: output, shape index: {1}]
  %7 = xla_tuple %s5, %s6
  %s8 = sld [smem:[#allocation0]]
  $region81: #{tpu_custom_call.1} parent=0
    _
  %s10 = ssub.s32 1, %s8
  %s11 = scalar_select 0, %s10, %s8
  $region1: #{tpu_custom_call.1} parent=0
    #allocation2 [shape = 'u8[262144]{0}', space=vmem, size = 0x40000, scoped, tag = 'input window, operand 0']
    #allocation3 [shape = 's32[2]{0}', space=sflag, size = 0x8, scoped, tag = 'scoped memory for tpu_custom_call.1']
    #allocation4 [shape = 's32[2]{0}', space=sflag, size = 0x8, scoped, tag = 'scoped memory for tpu_custom_call.1']
    #allocation5 [shape = 'u8[131072]{0}', space=vmem, size = 0x20000, scoped, tag = 'input window, operand 1, single buffered']
    #allocation6 [shape = 's32[1]{0}', space=sflag, size = 0x4, scoped, tag = 'scoped memory for tpu_custom_call.1']
    #allocation7 [shape = 'u8[512]{0}', space=vmem, size = 0x400, scoped, tag = 'input window, operand 2, single buffered']
    #allocation8 [shape = 'u8[512]{0}', space=vmem, size = 0x400, scoped, tag = 'input window, operand 3, single buffered']
    #allocation9 [shape = 's32[1]{0}', space=sflag, size = 0x4, scoped, tag = 'scoped memory for tpu_custom_call.1']
    #allocation10 [shape = 'u8[8192]{0}', space=vmem, size = 0x2000, scoped, tag = 'input window, operand 4']
    #allocation11 [shape = 'u8[131072]{0}', space=vmem, size = 0x20000, scoped, tag = 'output window, operand 0']
    #allocation12 [shape = 'u8[8192]{0}', space=vmem, size = 0x2000, scoped, tag = 'output window, operand 1']
    #allocation13 [shape = 's32[2]{0}', space=sflag, size = 0x8, scoped, tag = 'scoped memory for tpu_custom_call.1']
    %12 = vsyncpa [#allocation3], 0
    %s13 = scalar_lea.sflag [#allocation3], 1
    %14 = vsyncpa %s13, 0
    %15 = vsyncpa [#allocation6], 0
    %16 = vsyncpa [#allocation9], 0
    %17 = vsyncpa [#allocation4], 0
    %s18 = scalar_lea.sflag [#allocation4], 1
    %19 = vsyncpa %s18, 0
    %20 = vsyncpa [#allocation13], 0
    %s21 = scalar_lea.sflag [#allocation13], 1
    %22 = vsyncpa %s21, 0
    loop: start=0, step=1, limit=4
    $region2: #{tpu_custom_call.1} parent=1 // loop_pre_header
      _
    $region3: #{tpu_custom_call.1} parent=1 // loop_header
      %s24 = sphi 0, %s28
      %p25 = scmp.ge.s32.totalorder %s24, 4
      %s34 = sphi 0, %s36
      %s37 = sphi 0, %s34
      %s38 = sphi 0, %s37
      %s54 = sphi 0, %s38
      %s58 = sphi 0, %s58
      %s60 = sphi 0, %s58
      %s61 = sphi 0, %s60
      %s75 = sphi 0, %s61
      %s79 = sphi 0, %s79
      %s81 = sphi 0, %s79
      %s82 = sphi 0, %s81
      %s96 = sphi 0, %s82
      %s100 = sphi 0, %s100
      %s102 = sphi 0, %s100
      %s103 = sphi 0, %s102
      %s117 = sphi 0, %s103
      %s123 = sphi 0, %s125
      %s126 = sphi 0, %s123
      %s127 = sphi 0, %s126
      %s143 = sphi 0, %s127
      %s149 = sphi 0, %s151
      %s152 = sphi 0, %s149
      %s153 = sphi 0, %s152
      %s169 = sphi 0, %s153
      %s175 = sphi 0, %s177
      %s178 = sphi 0, %s175
      %s179 = sphi 0, %s178
      %s195 = sphi 0, %s179
    $region4: #{tpu_custom_call.1} parent=1 // loop_header_branch
      %27 = sbr.rel (%p25) target = $region8
    $region5: #{tpu_custom_call.1} parent=1 // loop_body
      %s29 = ssub.s32 %s24, 1
      %s30 = ssub.s32 %s24, 2
      %s31 = sadd.s32 %s24, 1
      %s32 = ssub.s32 %s24, %s31
      %p33 = scmp.eq.s32.totalorder %s32, 0
      %s35 = sadd.s32 %s34, 1
      %s36 = scalar_select %p33, %s34, %s35
      %p39 = pneg %p33
      %p40 = scmp.eq.s32.totalorder %s24, 1
      %p41 = por %p39, %p40
      %p42 = scmp.ne.s32.totalorder %s34, %s37
      %p43 = scmp.eq.s32.totalorder %s24, 0
      %p44 = por %p42, %p43
      %p45 = scmp.ne.s32.totalorder %s34, %s37
      %p46 = scmp.eq.s32.totalorder %s29, 1
      %p47 = por %p45, %p46
      %p48 = scmp.ne.s32.totalorder %s37, %s38
      %p49 = scmp.eq.s32.totalorder %s29, 0
      %p50 = por %p48, %p49
      %p51 = scmp.ne.s32.totalorder %s37, %s38
      %p52 = scmp.eq.s32.totalorder %s30, 1
      %p53 = por %p51, %p52
      %p55 = scmp.ne.s32.totalorder %s38, %s54
      %p56 = scmp.eq.s32.totalorder %s30, 0
      %p57 = por %p55, %p56
      %s59 = sadd.s32 %s58, 1
      %p62 = scmp.eq.s32.totalorder %s24, 1
      %p63 = scmp.ne.s32.totalorder %s58, %s60
      %p64 = scmp.eq.s32.totalorder %s24, 0
      %p65 = por %p63, %p64
      %p66 = scmp.ne.s32.totalorder %s58, %s60
      %p67 = scmp.eq.s32.totalorder %s29, 1
      %p68 = por %p66, %p67
      %p69 = scmp.ne.s32.totalorder %s60, %s61
      %p70 = scmp.eq.s32.totalorder %s29, 0
      %p71 = por %p69, %p70
      %p72 = scmp.ne.s32.totalorder %s60, %s61
      %p73 = scmp.eq.s32.totalorder %s30, 1
      %p74 = por %p72, %p73
      %p76 = scmp.ne.s32.totalorder %s61, %s75
      %p77 = scmp.eq.s32.totalorder %s30, 0
      %p78 = por %p76, %p77
      %s80 = sadd.s32 %s79, 1
      %p83 = scmp.eq.s32.totalorder %s24, 1
      %p84 = scmp.ne.s32.totalorder %s79, %s81
      %p85 = scmp.eq.s32.totalorder %s24, 0
      %p86 = por %p84, %p85
      %p87 = scmp.ne.s32.totalorder %s79, %s81
      %p88 = scmp.eq.s32.totalorder %s29, 1
      %p89 = por %p87, %p88
      %p90 = scmp.ne.s32.totalorder %s81, %s82
      %p91 = scmp.eq.s32.totalorder %s29, 0
      %p92 = por %p90, %p91
      %p93 = scmp.ne.s32.totalorder %s81, %s82
      %p94 = scmp.eq.s32.totalorder %s30, 1
      %p95 = por %p93, %p94
      %p97 = scmp.ne.s32.totalorder %s82, %s96
      %p98 = scmp.eq.s32.totalorder %s30, 0
      %p99 = por %p97, %p98
      %s101 = sadd.s32 %s100, 1
      %p104 = scmp.eq.s32.totalorder %s24, 1
      %p105 = scmp.ne.s32.totalorder %s100, %s102
      %p106 = scmp.eq.s32.totalorder %s24, 0
      %p107 = por %p105, %p106
      %p108 = scmp.ne.s32.totalorder %s100, %s102
      %p109 = scmp.eq.s32.totalorder %s29, 1
      %p110 = por %p108, %p109
      %p111 = scmp.ne.s32.totalorder %s102, %s103
      %p112 = scmp.eq.s32.totalorder %s29, 0
      %p113 = por %p111, %p112
      %p114 = scmp.ne.s32.totalorder %s102, %s103
      %p115 = scmp.eq.s32.totalorder %s30, 1
      %p116 = por %p114, %p115
      %p118 = scmp.ne.s32.totalorder %s103, %s117
      %p119 = scmp.eq.s32.totalorder %s30, 0
      %p120 = por %p118, %p119
      %s121 = ssub.s32 %s24, %s31
      %p122 = scmp.eq.s32.totalorder %s121, 0
      %s124 = sadd.s32 %s123, 1
      %s125 = scalar_select %p122, %s123, %s124
      %p128 = pneg %p122
      %p129 = scmp.eq.s32.totalorder %s24, 1
      %p130 = por %p128, %p129
      %p131 = scmp.ne.s32.totalorder %s123, %s126
      %p132 = scmp.eq.s32.totalorder %s24, 0
      %p133 = por %p131, %p132
      %p134 = scmp.ne.s32.totalorder %s123, %s126
      %p135 = scmp.eq.s32.totalorder %s29, 1
      %p136 = por %p134, %p135
      %p137 = scmp.ne.s32.totalorder %s126, %s127
      %p138 = scmp.eq.s32.totalorder %s29, 0
      %p139 = por %p137, %p138
      %p140 = scmp.ne.s32.totalorder %s126, %s127
      %p141 = scmp.eq.s32.totalorder %s30, 1
      %p142 = por %p140, %p141
      %p144 = scmp.ne.s32.totalorder %s127, %s143
      %p145 = scmp.eq.s32.totalorder %s30, 0
      %p146 = por %p144, %p145
      %s147 = ssub.s32 %s24, %s31
      %p148 = scmp.eq.s32.totalorder %s147, 0
      %s150 = sadd.s32 %s149, 1
      %s151 = scalar_select %p148, %s149, %s150
      %p154 = pneg %p148
      %p155 = scmp.eq.s32.totalorder %s24, 1
      %p156 = por %p154, %p155
      %p157 = scmp.ne.s32.totalorder %s149, %s152
      %p158 = scmp.eq.s32.totalorder %s24, 0
      %p159 = por %p157, %p158
      %p160 = scmp.ne.s32.totalorder %s149, %s152
      %p161 = scmp.eq.s32.totalorder %s29, 1
      %p162 = por %p160, %p161
      %p163 = scmp.ne.s32.totalorder %s152, %s153
      %p164 = scmp.eq.s32.totalorder %s29, 0
      %p165 = por %p163, %p164
      %p166 = scmp.ne.s32.totalorder %s152, %s153
      %p167 = scmp.eq.s32.totalorder %s30, 1
      %p168 = por %p166, %p167
      %p170 = scmp.ne.s32.totalorder %s153, %s169
      %p171 = scmp.eq.s32.totalorder %s30, 0
      %p172 = por %p170, %p171
      %s173 = ssub.s32 %s24, %s31
      %p174 = scmp.eq.s32.totalorder %s173, 0
      %s176 = sadd.s32 %s175, 1
      %s177 = scalar_select %p174, %s175, %s176
      %p180 = pneg %p174
      %p181 = scmp.eq.s32.totalorder %s24, 1
      %p182 = por %p180, %p181
      %p183 = scmp.ne.s32.totalorder %s175, %s178
      %p184 = scmp.eq.s32.totalorder %s24, 0
      %p185 = por %p183, %p184
      %p186 = scmp.ne.s32.totalorder %s175, %s178
      %p187 = scmp.eq.s32.totalorder %s29, 1
      %p188 = por %p186, %p187
      %p189 = scmp.ne.s32.totalorder %s178, %s179
      %p190 = scmp.eq.s32.totalorder %s29, 0
      %p191 = por %p189, %p190
      %p192 = scmp.ne.s32.totalorder %s178, %s179
      %p193 = scmp.eq.s32.totalorder %s30, 1
      %p194 = por %p192, %p193
      %p196 = scmp.ne.s32.totalorder %s179, %s195
      %p197 = scmp.eq.s32.totalorder %s30, 0
      %p198 = por %p196, %p197
      %p199 = scmp.le.s32.totalorder 1, %s24
      %p200 = scmp.lt.s32.totalorder %s24, 3
      %p201 = pnand %p199, %p200
      %p202 = pneg %p201
      // Predicated region
      $region9: #{tpu_custom_call.1} parent=5 // pred_check
        _
      $region10: #{tpu_custom_call.1} parent=5 // pred_check_branch
        %204 = sbr.rel (%p201) target = $region12
      $region11: #{tpu_custom_call.1} parent=5 // pred_region
        %s205 = ssub.s32 %s24, 1
        // Predicated region
        $region13: #{tpu_custom_call.1} parent=11 // pred_check
          %p206 = pneg %p71
        $region14: #{tpu_custom_call.1} parent=11 // pred_check_branch
          %208 = sbr.rel (%p206) target = $region16
        $region15: #{tpu_custom_call.1} parent=11 // pred_region
          %s210 = ssub.s32 4096, 4096
          %211 = vsyncadd [#allocation6], %s210
          %s212 = sshll.u32 [#allocation5], 4
          %s213 = int_to_ptr.vmem [resolvable:$true] %s212
          %218 = dma.hbm_to_vmem [thread:$0]  %s1, 4096, %s213, [#allocation6], 128, 128, 8
        $region16: #{tpu_custom_call.1} parent=11 // pred_fallthru
          _
        // Predicated region
        $region17: #{tpu_custom_call.1} parent=11 // pred_check
          %p219 = pneg %p92
        $region18: #{tpu_custom_call.1} parent=11 // pred_check_branch
          %221 = sbr.rel (%p219) target = $region20
        $region19: #{tpu_custom_call.1} parent=11 // pred_region
          %s223 = ssub.s32 16, 16
          %224 = vsyncadd [#allocation6], %s223
          %s226 = sshll.u32 [#allocation7], 4
          %s227 = int_to_ptr.vmem [resolvable:$true] %s226
          %229 = dma.hbm_to_vmem [thread:$0]  %s2, 16, %s227, [#allocation6]
        $region20: #{tpu_custom_call.1} parent=11 // pred_fallthru
          _
        // Predicated region
        $region21: #{tpu_custom_call.1} parent=11 // pred_check
          %p230 = pneg %p113
        $region22: #{tpu_custom_call.1} parent=11 // pred_check_branch
          %232 = sbr.rel (%p230) target = $region24
        $region23: #{tpu_custom_call.1} parent=11 // pred_region
          %s234 = ssub.s32 16, 16
          %235 = vsyncadd [#allocation9], %s234
          %s237 = sshll.u32 [#allocation8], 4
          %s238 = int_to_ptr.vmem [resolvable:$true] %s237
          %240 = dma.hbm_to_vmem [thread:$0]  %s3, 16, %s238, [#allocation9]
        $region24: #{tpu_custom_call.1} parent=11 // pred_fallthru
          _
      $region12: #{tpu_custom_call.1} parent=5 // pred_fallthru
        _
      %p241 = scmp.lt.s32.totalorder %s24, 2
      // Predicated region
      $region25: #{tpu_custom_call.1} parent=5 // pred_check
        %p242 = pneg %p241
      $region26: #{tpu_custom_call.1} parent=5 // pred_check_branch
        %244 = sbr.rel (%p242) target = $region28
      $region27: #{tpu_custom_call.1} parent=5 // pred_region
        // Predicated region
        $region29: #{tpu_custom_call.1} parent=27 // pred_check
          %p245 = pneg %p44
        $region30: #{tpu_custom_call.1} parent=27 // pred_check_branch
          %247 = sbr.rel (%p245) target = $region32
        $region31: #{tpu_custom_call.1} parent=27 // pred_region
          %s248 = sand.u32 %s24, 1
          %s249 = scalar_lea.sflag [#allocation3], %s248
          %s250 = sand.u32 %s34, 1
          %s251 = smul.addr %s250, 256
          %s252 = scalar_lea.vmem [#allocation2], %s251
          %s253 = smul.u32 16, %s24
          %s255 = ssub.s32 4096, 4096
          %256 = vsyncadd %s249, %s255
          %s257 = smul.addr %s253, 2
          %s258 = smul.addr %s257, 128
          %s259 = scalar_lea.hbm %s0, %s258
          %s260 = sshll.u32 %s252, 4
          %s261 = int_to_ptr.vmem [resolvable:$true] %s260
          %266 = dma.hbm_to_vmem [thread:$0]  %s259, 4096, %s261, %s249, 256, 256, 16
        $region32: #{tpu_custom_call.1} parent=27 // pred_fallthru
          _
        // Predicated region
        $region33: #{tpu_custom_call.1} parent=27 // pred_check
          %p267 = pneg %p133
        $region34: #{tpu_custom_call.1} parent=27 // pred_check_branch
          %269 = sbr.rel (%p267) target = $region36
        $region35: #{tpu_custom_call.1} parent=27 // pred_region
          %s270 = sand.u32 %s24, 1
          %s271 = scalar_lea.sflag [#allocation3], %s270
          %s272 = sand.u32 %s123, 1
          %s273 = smul.addr %s272, 8
          %s274 = scalar_lea.vmem [#allocation10], %s273
          %s276 = ssub.s32 128, 128
          %277 = vsyncadd %s271, %s276
          %s278 = smul.addr %s24, 128
          %s279 = scalar_lea.hbm %s4, %s278
          %s281 = sshll.u32 %s274, 4
          %s282 = int_to_ptr.vmem [resolvable:$true] %s281
          %284 = dma.hbm_to_vmem [thread:$0]  %s279, 128, %s282, %s271
        $region36: #{tpu_custom_call.1} parent=27 // pred_fallthru
          _
      $region28: #{tpu_custom_call.1} parent=5 // pred_fallthru
        _
      %p285 = scmp.le.s32.totalorder 1, %s24
      %p286 = scmp.lt.s32.totalorder %s24, 3
      %p287 = pnand %p285, %p286
      %p288 = pneg %p287
      // Predicated region
      $region37: #{tpu_custom_call.1} parent=5 // pred_check
        _
      $region38: #{tpu_custom_call.1} parent=5 // pred_check_branch
        %290 = sbr.rel (%p287) target = $region40
      $region39: #{tpu_custom_call.1} parent=5 // pred_region
        %s291 = ssub.s32 %s24, 1
        %s292 = sand.u32 %s29, 1
        %s293 = scalar_lea.sflag [#allocation3], %s292
        %s294 = sand.u32 %s37, 1
        %s295 = smul.addr %s294, 256
        %s296 = scalar_lea.vmem [#allocation2], %s295
        // Predicated region
        $region41: #{tpu_custom_call.1} parent=39 // pred_check
          %p297 = pneg %p50
        $region42: #{tpu_custom_call.1} parent=39 // pred_check_branch
          %299 = sbr.rel (%p297) target = $region44
        $region43: #{tpu_custom_call.1} parent=39 // pred_region
          %300 = dma.done %s293, 4096
        $region44: #{tpu_custom_call.1} parent=39 // pred_fallthru
          _
        // Predicated region
        $region45: #{tpu_custom_call.1} parent=39 // pred_check
          %p301 = pneg %p71
        $region46: #{tpu_custom_call.1} parent=39 // pred_check_branch
          %303 = sbr.rel (%p301) target = $region48
        $region47: #{tpu_custom_call.1} parent=39 // pred_region
          %304 = dma.done [#allocation6], 4096
        $region48: #{tpu_custom_call.1} parent=39 // pred_fallthru
          _
        // Predicated region
        $region49: #{tpu_custom_call.1} parent=39 // pred_check
          %p305 = pneg %p92
        $region50: #{tpu_custom_call.1} parent=39 // pred_check_branch
          %307 = sbr.rel (%p305) target = $region52
        $region51: #{tpu_custom_call.1} parent=39 // pred_region
          %308 = dma.done [#allocation6], 16
        $region52: #{tpu_custom_call.1} parent=39 // pred_fallthru
          _
        // Predicated region
        $region53: #{tpu_custom_call.1} parent=39 // pred_check
          %p309 = pneg %p113
        $region54: #{tpu_custom_call.1} parent=39 // pred_check_branch
          %311 = sbr.rel (%p309) target = $region56
        $region55: #{tpu_custom_call.1} parent=39 // pred_region
          %312 = dma.done [#allocation9], 16
        $region56: #{tpu_custom_call.1} parent=39 // pred_fallthru
          _
        %s313 = sand.u32 %s29, 1
        %s314 = scalar_lea.sflag [#allocation3], %s313
        %s315 = sand.u32 %s126, 1
        %s316 = smul.addr %s315, 8
        %s317 = scalar_lea.vmem [#allocation10], %s316
        // Predicated region
        $region57: #{tpu_custom_call.1} parent=39 // pred_check
          %p318 = pneg %p139
        $region58: #{tpu_custom_call.1} parent=39 // pred_check_branch
          %320 = sbr.rel (%p318) target = $region60
        $region59: #{tpu_custom_call.1} parent=39 // pred_region
          %321 = dma.done %s314, 128
        $region60: #{tpu_custom_call.1} parent=39 // pred_fallthru
          _
        %s322 = sand.u32 %s29, 1
        %s323 = scalar_lea.sflag [#allocation3], %s322
        %s324 = sand.u32 %s37, 1
        %s325 = smul.addr %s324, 256
        %s326 = scalar_lea.vmem [#allocation2], %s325
        %p327 = pneg %p50
        %p328 = pneg %p47
        %p329 = pneg %p71
        %p330 = pneg %p68
        %p331 = pneg %p92
        %p332 = pneg %p89
        %p333 = pneg %p113
        %p334 = pneg %p110
        %s335 = sand.u32 %s29, 1
        %s336 = scalar_lea.sflag [#allocation3], %s335
        %s337 = sand.u32 %s126, 1
        %s338 = smul.addr %s337, 8
        %s339 = scalar_lea.vmem [#allocation10], %s338
        %p340 = pneg %p139
        %p341 = pneg %p136
        %p342 = pneg %p165
        %p343 = pneg %p162
        %s344 = sand.u32 %s152, 1
        %s345 = scalar_lea.sflag [#allocation4], %s344
        %s346 = sand.u32 %s152, 1
        %s347 = smul.addr %s346, 128
        %s348 = scalar_lea.vmem [#allocation11], %s347
        %p349 = pneg %p191
        %p350 = pneg %p188
        %s351 = sand.u32 %s178, 1
        %s352 = scalar_lea.sflag [#allocation13], %s351
        %s353 = sand.u32 %s178, 1
        %s354 = smul.addr %s353, 8
        %s355 = scalar_lea.vmem [#allocation12], %s354
        %s356 = smul.u32 16, %s29
        %s357 = smul.u32 16, %s29
        %v358 = vld [vmem:[%s296] sm:$0xff]
        %v359 = vld [vmem:[%s296 + $0x8] sm:$0xff]
        %v360 = vld [vmem:[%s296 + $0x10] sm:$0xff]
        %v361 = vld [vmem:[%s296 + $0x18] sm:$0xff]
        %v362 = vld [vmem:[%s296 + $0x20] sm:$0xff]
        %v363 = vld [vmem:[%s296 + $0x28] sm:$0xff]
        %v364 = vld [vmem:[%s296 + $0x30] sm:$0xff]
        %v365 = vld [vmem:[%s296 + $0x38] sm:$0xff]
        %v366 = vld [vmem:[%s296 + $0x40] sm:$0xff]
        %v367 = vld [vmem:[%s296 + $0x48] sm:$0xff]
        %v368 = vld [vmem:[%s296 + $0x50] sm:$0xff]
        %v369 = vld [vmem:[%s296 + $0x58] sm:$0xff]
        %v370 = vld [vmem:[%s296 + $0x60] sm:$0xff]
        %v371 = vld [vmem:[%s296 + $0x68] sm:$0xff]
        %v372 = vld [vmem:[%s296 + $0x70] sm:$0xff]
        %v373 = vld [vmem:[%s296 + $0x78] sm:$0xff]
        %v374 = vld [vmem:[%s296 + $0x80] sm:$0xff]
        %v375 = vld [vmem:[%s296 + $0x88] sm:$0xff]
        %v376 = vld [vmem:[%s296 + $0x90] sm:$0xff]
        %v377 = vld [vmem:[%s296 + $0x98] sm:$0xff]
        %v378 = vld [vmem:[%s296 + $0xa0] sm:$0xff]
        %v379 = vld [vmem:[%s296 + $0xa8] sm:$0xff]
        %v380 = vld [vmem:[%s296 + $0xb0] sm:$0xff]
        %v381 = vld [vmem:[%s296 + $0xb8] sm:$0xff]
        %v382 = vld [vmem:[%s296 + $0xc0] sm:$0xff]
        %v383 = vld [vmem:[%s296 + $0xc8] sm:$0xff]
        %v384 = vld [vmem:[%s296 + $0xd0] sm:$0xff]
        %v385 = vld [vmem:[%s296 + $0xd8] sm:$0xff]
        %v386 = vld [vmem:[%s296 + $0xe0] sm:$0xff]
        %v387 = vld [vmem:[%s296 + $0xe8] sm:$0xff]
        %v388 = vld [vmem:[%s296 + $0xf0] sm:$0xff]
        %v389 = vld [vmem:[%s296 + $0xf8] sm:$0xff]
        %v390 = vld [vmem:[#allocation5] sm:$0xff]
        %v391 = vld [vmem:[#allocation5 + $0x8] sm:$0xff]
        %v392 = vld [vmem:[#allocation5 + $0x10] sm:$0xff]
        %v393 = vld [vmem:[#allocation5 + $0x18] sm:$0xff]
        %v394 = vld [vmem:[#allocation5 + $0x20] sm:$0xff]
        %v395 = vld [vmem:[#allocation5 + $0x28] sm:$0xff]
        %v396 = vld [vmem:[#allocation5 + $0x30] sm:$0xff]
        %v397 = vld [vmem:[#allocation5 + $0x38] sm:$0xff]
        %v398 = vld [vmem:[#allocation5 + $0x40] sm:$0xff]
        %v399 = vld [vmem:[#allocation5 + $0x48] sm:$0xff]
        %v400 = vld [vmem:[#allocation5 + $0x50] sm:$0xff]
        %v401 = vld [vmem:[#allocation5 + $0x58] sm:$0xff]
        %v402 = vld [vmem:[#allocation5 + $0x60] sm:$0xff]
        %v403 = vld [vmem:[#allocation5 + $0x68] sm:$0xff]
        %v404 = vld [vmem:[#allocation5 + $0x70] sm:$0xff]
        %v405 = vld [vmem:[#allocation5 + $0x78] sm:$0xff]
        %v406 = vld [vmem:[#allocation5 + $0x80] sm:$0xff]
        %v407 = vld [vmem:[#allocation5 + $0x88] sm:$0xff]
        %v408 = vld [vmem:[#allocation5 + $0x90] sm:$0xff]
        %v409 = vld [vmem:[#allocation5 + $0x98] sm:$0xff]
        %v410 = vld [vmem:[#allocation5 + $0xa0] sm:$0xff]
        %v411 = vld [vmem:[#allocation5 + $0xa8] sm:$0xff]
        %v412 = vld [vmem:[#allocation5 + $0xb0] sm:$0xff]
        %v413 = vld [vmem:[#allocation5 + $0xb8] sm:$0xff]
        %v414 = vld [vmem:[#allocation5 + $0xc0] sm:$0xff]
        %v415 = vld [vmem:[#allocation5 + $0xc8] sm:$0xff]
        %v416 = vld [vmem:[#allocation5 + $0xd0] sm:$0xff]
        %v417 = vld [vmem:[#allocation5 + $0xd8] sm:$0xff]
        %v418 = vld [vmem:[#allocation5 + $0xe0] sm:$0xff]
        %v419 = vld [vmem:[#allocation5 + $0xe8] sm:$0xff]
        %v420 = vld [vmem:[#allocation5 + $0xf0] sm:$0xff]
        %v421 = vld [vmem:[#allocation5 + $0xf8] sm:$0xff]
        %v422 = vld [vmem:[#allocation7] sm:$0x1]
        %v424 = vlaneseq
        %v425 = vshrl.u32 %v424, 7
        %v426 = vsub.s32 0, %v425
        %v427 = vrot.slane %v422, %v426
        %429 = vmatprep.subr.mxu0 0.0
        %430 = vmatpush1.msra.mxu0 %v390
        %431 = vmatprep.subr.mxu0 0.0
        %432 = vmatpush1.msra.mxu0 %v391
        %433 = vmatprep.subr.mxu0 0.0
        %434 = vmatpush1.msra.mxu0 %v392
        %435 = vmatprep.subr.mxu0 0.0
        %436 = vmatpush1.msra.mxu0 %v393
        %437 = vmatprep.subr.mxu0 0.0
        %438 = vmatpush1.msra.mxu0 %v394
        %439 = vmatprep.subr.mxu0 0.0
        %440 = vmatpush1.msra.mxu0 %v395
        %441 = vmatprep.subr.mxu0 0.0
        %442 = vmatpush1.msra.mxu0 %v396
        %443 = vmatprep.subr.mxu0 0.0
        %444 = vmatpush1.msra.mxu0 %v397
        %445 = vmatprep.subr.mxu0 0.0
        %446 = vmatpush1.msra.mxu0 %v398
        %447 = vmatprep.subr.mxu0 0.0
        %448 = vmatpush1.msra.mxu0 %v399
        %449 = vmatprep.subr.mxu0 0.0
        %450 = vmatpush1.msra.mxu0 %v400
        %451 = vmatprep.subr.mxu0 0.0
        %452 = vmatpush1.msra.mxu0 %v401
        %453 = vmatprep.subr.mxu0 0.0
        %454 = vmatpush1.msra.mxu0 %v402
        %455 = vmatprep.subr.mxu0 0.0
        %456 = vmatpush1.msra.mxu0 %v403
        %457 = vmatprep.subr.mxu0 0.0
        %458 = vmatpush1.msra.mxu0 %v404
        %459 = vmatprep.subr.mxu0 0.0
        %460 = vmatpush1.msra.mxu0 %v405
        %461 = vmatprep.subr.mxu0 0.0
        %462 = vmatpush1.msra.mxu0 %v406
        %463 = vmatprep.subr.mxu0 0.0
        %464 = vmatpush1.msra.mxu0 %v407
        %465 = vmatprep.subr.mxu0 0.0
        %466 = vmatpush1.msra.mxu0 %v408
        %467 = vmatprep.subr.mxu0 0.0
        %468 = vmatpush1.msra.mxu0 %v409
        %469 = vmatprep.subr.mxu0 0.0
        %470 = vmatpush1.msra.mxu0 %v410
        %471 = vmatprep.subr.mxu0 0.0
        %472 = vmatpush1.msra.mxu0 %v411
        %473 = vmatprep.subr.mxu0 0.0
        %474 = vmatpush1.msra.mxu0 %v412
        %475 = vmatprep.subr.mxu0 0.0
        %476 = vmatpush1.msra.mxu0 %v413
        %477 = vmatprep.subr.mxu0 0.0
        %478 = vmatpush1.msra.mxu0 %v414
        %479 = vmatprep.subr.mxu0 0.0
        %480 = vmatpush1.msra.mxu0 %v415
        %481 = vmatprep.subr.mxu0 0.0
        %482 = vmatpush1.msra.mxu0 %v416
        %483 = vmatprep.subr.mxu0 0.0
        %484 = vmatpush1.msra.mxu0 %v417
        %485 = vmatprep.subr.mxu0 0.0
        %486 = vmatpush1.msra.mxu0 %v418
        %487 = vmatprep.subr.mxu0 0.0
        %488 = vmatpush1.msra.mxu0 %v419
        %489 = vmatprep.subr.mxu0 0.0
        %490 = vmatpush1.msra.mxu0 %v420
        %491 = vmatprep.subr.mxu0 0.0
        %492 = vmatpush1.msra.mxu0 %v421
        %493 = vmatprep.mubr.f32.mxu0 %v359
        %494 = vmatmul.mubr.f32.gmra.mrb[0].mxu0 %v358
        %v495 = vpop.f32.mrb[0].mxu0
        %v496 = vadd.f32 %v427, %v495
        %v497 = vpop.f32.mrb[0].mxu0
        %498 = vmatprep.mubr.f32.mxu0 %v361
        %499 = vmatmul.mubr.f32.gmra.mrb[0].mxu0 %v360
        %v500 = vpop.f32.mrb[0].mxu0
        %v501 = vadd.f32 %v427, %v500
        %v502 = vpop.f32.mrb[0].mxu0
        %503 = vmatprep.mubr.f32.mxu0 %v363
        %504 = vmatmul.mubr.f32.gmra.mrb[0].mxu0 %v362
        %v505 = vpop.f32.mrb[0].mxu0
        %v506 = vadd.f32 %v427, %v505
        %v507 = vpop.f32.mrb[0].mxu0
        %508 = vmatprep.mubr.f32.mxu0 %v365
        %509 = vmatmul.mubr.f32.gmra.mrb[0].mxu0 %v364
        %v510 = vpop.f32.mrb[0].mxu0
        %v511 = vadd.f32 %v427, %v510
        %v512 = vpop.f32.mrb[0].mxu0
        %513 = vmatprep.mubr.f32.mxu0 %v367
        %514 = vmatmul.mubr.f32.gmra.mrb[0].mxu0 %v366
        %v515 = vpop.f32.mrb[0].mxu0
        %v516 = vadd.f32 %v427, %v515
        %v517 = vpop.f32.mrb[0].mxu0
        %518 = vmatprep.mubr.f32.mxu0 %v369
        %519 = vmatmul.mubr.f32.gmra.mrb[0].mxu0 %v368
        %v520 = vpop.f32.mrb[0].mxu0
        %v521 = vadd.f32 %v427, %v520
        %v522 = vpop.f32.mrb[0].mxu0
        %523 = vmatprep.mubr.f32.mxu0 %v371
        %524 = vmatmul.mubr.f32.gmra.mrb[0].mxu0 %v370
        %v525 = vpop.f32.mrb[0].mxu0
        %v526 = vadd.f32 %v427, %v525
        %v527 = vpop.f32.mrb[0].mxu0
        %528 = vmatprep.mubr.f32.mxu0 %v373
        %529 = vmatmul.mubr.f32.gmra.mrb[0].mxu0 %v372
        %v530 = vpop.f32.mrb[0].mxu0
        %v531 = vadd.f32 %v427, %v530
        %v532 = vpop.f32.mrb[0].mxu0
        %533 = vmatprep.mubr.f32.mxu0 %v375
        %534 = vmatmul.mubr.f32.gmra.mrb[0].mxu0 %v374
        %v535 = vpop.f32.mrb[0].mxu0
        %v536 = vadd.f32 %v427, %v535
        %v537 = vpop.f32.mrb[0].mxu0
        %538 = vmatprep.mubr.f32.mxu0 %v377
        %539 = vmatmul.mubr.f32.gmra.mrb[0].mxu0 %v376
        %v540 = vpop.f32.mrb[0].mxu0
        %v541 = vadd.f32 %v427, %v540
        %v542 = vpop.f32.mrb[0].mxu0
        %543 = vmatprep.mubr.f32.mxu0 %v379
        %544 = vmatmul.mubr.f32.gmra.mrb[0].mxu0 %v378
        %v545 = vpop.f32.mrb[0].mxu0
        %v546 = vadd.f32 %v427, %v545
        %v547 = vpop.f32.mrb[0].mxu0
        %548 = vmatprep.mubr.f32.mxu0 %v381
        %549 = vmatmul.mubr.f32.gmra.mrb[0].mxu0 %v380
        %v550 = vpop.f32.mrb[0].mxu0
        %v551 = vadd.f32 %v427, %v550
        %v552 = vpop.f32.mrb[0].mxu0
        %553 = vmatprep.mubr.f32.mxu0 %v383
        %554 = vmatmul.mubr.f32.gmra.mrb[0].mxu0 %v382
        %v555 = vpop.f32.mrb[0].mxu0
        %v556 = vadd.f32 %v427, %v555
        %v557 = vpop.f32.mrb[0].mxu0
        %558 = vmatprep.mubr.f32.mxu0 %v385
        %559 = vmatmul.mubr.f32.gmra.mrb[0].mxu0 %v384
        %v560 = vpop.f32.mrb[0].mxu0
        %v561 = vadd.f32 %v427, %v560
        %v562 = vpop.f32.mrb[0].mxu0
        %563 = vmatprep.mubr.f32.mxu0 %v387
        %564 = vmatmul.mubr.f32.gmra.mrb[0].mxu0 %v386
        %v565 = vpop.f32.mrb[0].mxu0
        %v566 = vadd.f32 %v427, %v565
        %v567 = vpop.f32.mrb[0].mxu0
        %568 = vmatprep.mubr.f32.mxu0 %v389
        %569 = vmatmul.mubr.f32.gmra.mrb[0].mxu0 %v388
        %v570 = vpop.f32.mrb[0].mxu0
        %v571 = vadd.f32 %v427, %v570
        %v572 = vpop.f32.mrb[0].mxu0
        %573 = vdwg.mxu0
        %vm574 = vcmp.gt.f32.partialorder %v496, 0.0
        %vm575 = vcmp.gt.f32.partialorder %v501, 0.0
        %vm576 = vcmp.gt.f32.partialorder %v506, 0.0
        %vm577 = vcmp.gt.f32.partialorder %v511, 0.0
        %vm578 = vcmp.gt.f32.partialorder %v516, 0.0
        %vm579 = vcmp.gt.f32.partialorder %v521, 0.0
        %vm580 = vcmp.gt.f32.partialorder %v526, 0.0
        %vm581 = vcmp.gt.f32.partialorder %v531, 0.0
        %vm582 = vcmp.gt.f32.partialorder %v536, 0.0
        %vm583 = vcmp.gt.f32.partialorder %v541, 0.0
        %vm584 = vcmp.gt.f32.partialorder %v546, 0.0
        %vm585 = vcmp.gt.f32.partialorder %v551, 0.0
        %vm586 = vcmp.gt.f32.partialorder %v556, 0.0
        %vm587 = vcmp.gt.f32.partialorder %v561, 0.0
        %vm588 = vcmp.gt.f32.partialorder %v566, 0.0
        %vm589 = vcmp.gt.f32.partialorder %v571, 0.0
        %v590 = vld [vmem:[#allocation8] sm:$0x1]
        %v592 = vlaneseq
        %v593 = vshrl.u32 %v592, 7
        %v594 = vsub.s32 0, %v593
        %v595 = vrot.slane %v590, %v594
        %v597 = vmul.f32 %v595, %v496
        %v598 = vmul.f32 %v595, %v501
        %v599 = vmul.f32 %v595, %v506
        %v600 = vmul.f32 %v595, %v511
        %v601 = vmul.f32 %v595, %v516
        %v602 = vmul.f32 %v595, %v521
        %v603 = vmul.f32 %v595, %v526
        %v604 = vmul.f32 %v595, %v531
        %v605 = vmul.f32 %v595, %v536
        %v606 = vmul.f32 %v595, %v541
        %v607 = vmul.f32 %v595, %v546
        %v608 = vmul.f32 %v595, %v551
        %v609 = vmul.f32 %v595, %v556
        %v610 = vmul.f32 %v595, %v561
        %v611 = vmul.f32 %v595, %v566
        %v612 = vmul.f32 %v595, %v571
        %v613 = vsel %vm574, %v496, %v597
        %v614 = vsel %vm575, %v501, %v598
        %v615 = vsel %vm576, %v506, %v599
        %v616 = vsel %vm577, %v511, %v600
        %v617 = vsel %vm578, %v516, %v601
        %v618 = vsel %vm579, %v521, %v602
        %v619 = vsel %vm580, %v526, %v603
        %v620 = vsel %vm581, %v531, %v604
        %v621 = vsel %vm582, %v536, %v605
        %v622 = vsel %vm583, %v541, %v606
        %v623 = vsel %vm584, %v546, %v607
        %v624 = vsel %vm585, %v551, %v608
        %v625 = vsel %vm586, %v556, %v609
        %v626 = vsel %vm587, %v561, %v610
        %v627 = vsel %vm588, %v566, %v611
        %v628 = vsel %vm589, %v571, %v612
        %vm629 = vcmask 523264
        %630 = vst.msk [vmem:[%s348] sm:$0xff] %vm629, %v613
        %631 = vst.msk [vmem:[%s348 + $0x8] sm:$0xff] %vm629, %v614
        %632 = vst.msk [vmem:[%s348 + $0x10] sm:$0xff] %vm629, %v615
        %633 = vst.msk [vmem:[%s348 + $0x18] sm:$0xff] %vm629, %v616
        %634 = vst.msk [vmem:[%s348 + $0x20] sm:$0xff] %vm629, %v617
        %635 = vst.msk [vmem:[%s348 + $0x28] sm:$0xff] %vm629, %v618
        %636 = vst.msk [vmem:[%s348 + $0x30] sm:$0xff] %vm629, %v619
        %637 = vst.msk [vmem:[%s348 + $0x38] sm:$0xff] %vm629, %v620
        %638 = vst.msk [vmem:[%s348 + $0x40] sm:$0xff] %vm629, %v621
        %639 = vst.msk [vmem:[%s348 + $0x48] sm:$0xff] %vm629, %v622
        %640 = vst.msk [vmem:[%s348 + $0x50] sm:$0xff] %vm629, %v623
        %641 = vst.msk [vmem:[%s348 + $0x58] sm:$0xff] %vm629, %v624
        %642 = vst.msk [vmem:[%s348 + $0x60] sm:$0xff] %vm629, %v625
        %643 = vst.msk [vmem:[%s348 + $0x68] sm:$0xff] %vm629, %v626
        %644 = vst.msk [vmem:[%s348 + $0x70] sm:$0xff] %vm629, %v627
        %645 = vst.msk [vmem:[%s348 + $0x78] sm:$0xff] %vm629, %v628
        %v646 = vld [vmem:[%s317] sm:$0xff]
        %647 = vmatprep.subr.mxu0 0.0
        %648 = vmatpush1.msra.mxu0 %v613
        %649 = vmatprep.subr.mxu0 0.0
        %650 = vmatpush1.msra.mxu0 %v614
        %651 = vmatprep.subr.mxu0 0.0
        %652 = vmatpush1.msra.mxu0 %v615
        %653 = vmatprep.subr.mxu0 0.0
        %654 = vmatpush1.msra.mxu0 %v616
        %655 = vmatprep.subr.mxu0 0.0
        %656 = vmatpush1.msra.mxu0 %v617
        %657 = vmatprep.subr.mxu0 0.0
        %658 = vmatpush1.msra.mxu0 %v618
        %659 = vmatprep.subr.mxu0 0.0
        %660 = vmatpush1.msra.mxu0 %v619
        %661 = vmatprep.subr.mxu0 0.0
        %662 = vmatpush1.msra.mxu0 %v620
        %663 = vmatprep.subr.mxu0 0.0
        %664 = vmatpush1.msra.mxu0 %v621
        %665 = vmatprep.subr.mxu0 0.0
        %666 = vmatpush1.msra.mxu0 %v622
        %667 = vmatprep.subr.mxu0 0.0
        %668 = vmatpush1.msra.mxu0 %v623
        %669 = vmatprep.subr.mxu0 0.0
        %670 = vmatpush1.msra.mxu0 %v624
        %671 = vmatprep.subr.mxu0 0.0
        %672 = vmatpush1.msra.mxu0 %v625
        %673 = vmatprep.subr.mxu0 0.0
        %674 = vmatpush1.msra.mxu0 %v626
        %675 = vmatprep.subr.mxu0 0.0
        %676 = vmatpush1.msra.mxu0 %v627
        %677 = vmatprep.subr.mxu0 0.0
        %678 = vmatpush1.msra.mxu0 %v628
        %679 = vmatprep.subr.mxu0 0.0
        %680 = vmatpush1.msra.mxu0 0.0
        %681 = vmatprep.subr.mxu0 0.0
        %682 = vmatpush1.msra.mxu0 0.0
        %683 = vmatprep.subr.mxu0 0.0
        %684 = vmatpush1.msra.mxu0 0.0
        %685 = vmatprep.subr.mxu0 0.0
        %686 = vmatpush1.msra.mxu0 0.0
        %687 = vmatprep.subr.mxu0 0.0
        %688 = vmatpush1.msra.mxu0 0.0
        %689 = vmatprep.subr.mxu0 0.0
        %690 = vmatpush1.msra.mxu0 0.0
        %691 = vmatprep.subr.mxu0 0.0
        %692 = vmatpush1.msra.mxu0 0.0
        %693 = vmatprep.subr.mxu0 0.0
        %694 = vmatpush1.msra.mxu0 0.0
        %695 = vmatprep.subr.mxu0 0.0
        %696 = vmatpush1.msra.mxu0 0.0
        %697 = vmatprep.subr.mxu0 0.0
        %698 = vmatpush1.msra.mxu0 0.0
        %699 = vmatprep.subr.mxu0 0.0
        %700 = vmatpush1.msra.mxu0 0.0
        %701 = vmatprep.subr.mxu0 0.0
        %702 = vmatpush1.msra.mxu0 0.0
        %703 = vmatprep.subr.mxu0 0.0
        %704 = vmatpush1.msra.mxu0 0.0
        %705 = vmatprep.subr.mxu0 0.0
        %706 = vmatpush1.msra.mxu0 0.0
        %707 = vmatprep.subr.mxu0 0.0
        %708 = vmatpush1.msra.mxu0 0.0
        %709 = vmatprep.subr.mxu0 0.0
        %710 = vmatpush1.msra.mxu0 0.0
        %711 = vmatprep.mubr.f32.mxu0 0.0
        %712 = vmatmul.mubr.f32.gmra.mrb[0].mxu0 %v646
        %v713 = vpop.f32.mrb[0].mxu0
        %v714 = vadd.f32 0.0, %v713
        %v715 = vpop.f32.mrb[0].mxu0
        %716 = vdwg.mxu0
        %717 = vst.msk [vmem:[%s355] sm:$0xff] %vm629, %v714
        %s718 = sand.u32 %s152, 1
        %s719 = scalar_lea.sflag [#allocation4], %s718
        %s720 = sand.u32 %s152, 1
        %s721 = smul.addr %s720, 128
        %s722 = scalar_lea.vmem [#allocation11], %s721
        %s723 = sand.u32 %s178, 1
        %s724 = scalar_lea.sflag [#allocation13], %s723
        %s725 = sand.u32 %s178, 1
        %s726 = smul.addr %s725, 8
        %s727 = scalar_lea.vmem [#allocation12], %s726
        // Predicated region
        $region61: #{tpu_custom_call.1} parent=39 // pred_check
          %p728 = pneg %p162
        $region62: #{tpu_custom_call.1} parent=39 // pred_check_branch
          %730 = sbr.rel (%p728) target = $region64
        $region63: #{tpu_custom_call.1} parent=39 // pred_region
          %s731 = smul.u32 16, %s29
          %s733 = ssub.s32 2048, 2048
          %734 = vsyncadd %s719, %s733
          %s735 = smul.addr %s731, 128
          %s736 = scalar_lea.hbm %s5, %s735
          %s737 = sshll.u32 %s722, 4
          %s738 = int_to_ptr.vmem [resolvable:$true] %s737
          %743 = dma.vmem_to_hbm [thread:$0]  %s738, 2048, %s736, %s719, 128, 128, 8
        $region64: #{tpu_custom_call.1} parent=39 // pred_fallthru
          _
        // Predicated region
        $region65: #{tpu_custom_call.1} parent=39 // pred_check
          %p744 = pneg %p188
        $region66: #{tpu_custom_call.1} parent=39 // pred_check_branch
          %746 = sbr.rel (%p744) target = $region68
        $region67: #{tpu_custom_call.1} parent=39 // pred_region
          %s748 = ssub.s32 128, 128
          %749 = vsyncadd %s724, %s748
          %s750 = smul.addr %s29, 128
          %s751 = scalar_lea.hbm %s6, %s750
          %s753 = sshll.u32 %s727, 4
          %s754 = int_to_ptr.vmem [resolvable:$true] %s753
          %756 = dma.vmem_to_hbm [thread:$0]  %s754, 128, %s751, %s724
        $region68: #{tpu_custom_call.1} parent=39 // pred_fallthru
          _
      $region40: #{tpu_custom_call.1} parent=5 // pred_fallthru
        _
      %p757 = scmp.le.s32.totalorder 2, %s24
      // Predicated region
      $region69: #{tpu_custom_call.1} parent=5 // pred_check
        %p758 = pneg %p757
      $region70: #{tpu_custom_call.1} parent=5 // pred_check_branch
        %760 = sbr.rel (%p758) target = $region72
      $region71: #{tpu_custom_call.1} parent=5 // pred_region
        %s761 = ssub.s32 %s24, 2
        // Predicated region
        $region73: #{tpu_custom_call.1} parent=71 // pred_check
          %p762 = pneg %p168
        $region74: #{tpu_custom_call.1} parent=71 // pred_check_branch
          %764 = sbr.rel (%p762) target = $region76
        $region75: #{tpu_custom_call.1} parent=71 // pred_region
          %s765 = sand.u32 %s153, 1
          %s766 = scalar_lea.sflag [#allocation4], %s765
          %s767 = sand.u32 %s153, 1
          %s768 = smul.addr %s767, 128
          %s769 = scalar_lea.vmem [#allocation11], %s768
          %770 = dma.done %s766, 2048
        $region76: #{tpu_custom_call.1} parent=71 // pred_fallthru
          _
        // Predicated region
        $region77: #{tpu_custom_call.1} parent=71 // pred_check
          %p771 = pneg %p194
        $region78: #{tpu_custom_call.1} parent=71 // pred_check_branch
          %773 = sbr.rel (%p771) target = $region80
        $region79: #{tpu_custom_call.1} parent=71 // pred_region
          %s774 = sand.u32 %s179, 1
          %s775 = scalar_lea.sflag [#allocation13], %s774
          %s776 = sand.u32 %s179, 1
          %s777 = smul.addr %s776, 8
          %s778 = scalar_lea.vmem [#allocation12], %s777
          %779 = dma.done %s775, 128
        $region80: #{tpu_custom_call.1} parent=71 // pred_fallthru
          _
      $region72: #{tpu_custom_call.1} parent=5 // pred_fallthru
        _
    $region6: #{tpu_custom_call.1} parent=1 // loop_footer
      %s28 = sadd.s32 1, %s24
    $region7: #{tpu_custom_call.1} parent=1 // loop_footer_branch
      %23 = sbr.rel target = $region3
    $region8: #{tpu_custom_call.1} parent=1 // loop_exit
      _
    %780 = vsyncpa [#allocation3], 1
    %s781 = scalar_lea.sflag [#allocation3], 1
    %782 = vsyncpa %s781, 1
    %783 = vsyncpa [#allocation6], 1
    %784 = vsyncpa [#allocation9], 1
    %785 = vsyncpa [#allocation4], 1
    %s786 = scalar_lea.sflag [#allocation4], 1
    %787 = vsyncpa %s786, 1
    %788 = vsyncpa [#allocation13], 1
    %s789 = scalar_lea.sflag [#allocation13], 1
    %790 = vsyncpa %s789, 1

// kernel: tpu_custom_call.1
$region0: #{tpu_custom_call.1}
  #allocation0 [shape = 'u32[]', space=smem, size = 0x4, offset = 0x4, fixed_abs, tag = 'smem constant byte address 0x4 - core index']
  #allocation1 [shape = 'u32[144,128]{1,0:T(1,128)}', space=vmem, size = 0x12000, scoped, tag = 'internal scratch']
  %s0 = inlined_call_operand.hbm [shape: f32[256,256], index: 0, kind: input, shape index: {}]
  %s1 = inlined_call_operand.hbm [shape: f32[256,64], index: 1, kind: input, shape index: {}]
  %s2 = inlined_call_operand.hbm [shape: f32[1,64], index: 2, kind: input, shape index: {}]
  %s3 = inlined_call_operand.hbm [shape: f32[1,64], index: 3, kind: input, shape index: {}]
  %s4 = inlined_call_operand.hbm [shape: f32[8,256], index: 4, kind: input, shape index: {}]
  %s5 = inlined_call_operand.hbm [shape: f32[256,64], index: 5, kind: output, shape index: {0}]
  %s6 = inlined_call_operand.hbm [shape: f32[16,64], index: 6, kind: output, shape index: {1}]
  %7 = xla_tuple %s5, %s6
  %s8 = sld [smem:[#allocation0]]
  $region81: #{tpu_custom_call.1} parent=0
    _
  %s10 = ssub.s32 1, %s8
  %s11 = scalar_select 0, %s10, %s8
  $region1: #{tpu_custom_call.1} parent=0
    #allocation2 [shape = 'u8[262144]{0}', space=vmem, size = 0x40000, scoped, tag = 'input window, operand 0']
    #allocation3 [shape = 's32[2]{0}', space=sflag, size = 0x8, scoped, tag = 'scoped memory for tpu_custom_call.1']
    #allocation4 [shape = 's32[2]{0}', space=sflag, size = 0x8, scoped, tag = 'scoped memory for tpu_custom_call.1']
    #allocation5 [shape = 'u8[131072]{0}', space=vmem, size = 0x20000, scoped, tag = 'input window, operand 1, single buffered']
    #allocation6 [shape = 's32[1]{0}', space=sflag, size = 0x4, scoped, tag = 'scoped memory for tpu_custom_call.1']
    #allocation7 [shape = 'u8[512]{0}', space=vmem, size = 0x400, scoped, tag = 'input window, operand 2, single buffered']
    #allocation8 [shape = 'u8[512]{0}', space=vmem, size = 0x400, scoped, tag = 'input window, operand 3, single buffered']
    #allocation9 [shape = 's32[1]{0}', space=sflag, size = 0x4, scoped, tag = 'scoped memory for tpu_custom_call.1']
    #allocation10 [shape = 'u8[8192]{0}', space=vmem, size = 0x2000, scoped, tag = 'input window, operand 4']
    #allocation11 [shape = 'u8[131072]{0}', space=vmem, size = 0x20000, scoped, tag = 'output window, operand 0']
    #allocation12 [shape = 'u8[8192]{0}', space=vmem, size = 0x2000, scoped, tag = 'output window, operand 1']
    #allocation13 [shape = 's32[2]{0}', space=sflag, size = 0x8, scoped, tag = 'scoped memory for tpu_custom_call.1']
    %12 = vsyncpa [#allocation3], 0
    %s13 = scalar_lea.sflag [#allocation3], 1
    %14 = vsyncpa %s13, 0
    %15 = vsyncpa [#allocation6], 0
    %16 = vsyncpa [#allocation9], 0
    %17 = vsyncpa [#allocation4], 0
    %s18 = scalar_lea.sflag [#allocation4], 1
    %19 = vsyncpa %s18, 0
    %20 = vsyncpa [#allocation13], 0
    %s21 = scalar_lea.sflag [#allocation13], 1
    %22 = vsyncpa %s21, 0
    loop: start=0, step=1, limit=4
    $region2: #{tpu_custom_call.1} parent=1 // loop_pre_header
      _
    $region3: #{tpu_custom_call.1} parent=1 // loop_header
      %s24 = sphi 0, %s28
      %p25 = scmp.ge.s32.totalorder %s24, 4
      %s34 = sphi 0, %s36
      %s37 = sphi 0, %s34
      %s38 = sphi 0, %s37
      %s54 = sphi 0, %s38
      %s58 = sphi 0, %s58
      %s60 = sphi 0, %s58
      %s61 = sphi 0, %s60
      %s75 = sphi 0, %s61
      %s79 = sphi 0, %s79
      %s81 = sphi 0, %s79
      %s82 = sphi 0, %s81
      %s96 = sphi 0, %s82
      %s100 = sphi 0, %s100
      %s102 = sphi 0, %s100
      %s103 = sphi 0, %s102
      %s117 = sphi 0, %s103
      %s123 = sphi 0, %s125
      %s126 = sphi 0, %s123
      %s127 = sphi 0, %s126
      %s143 = sphi 0, %s127
      %s149 = sphi 0, %s151
      %s152 = sphi 0, %s149
      %s153 = sphi 0, %s152
      %s169 = sphi 0, %s153
      %s175 = sphi 0, %s177
      %s178 = sphi 0, %s175
      %s179 = sphi 0, %s178
      %s195 = sphi 0, %s179
    $region4: #{tpu_custom_call.1} parent=1 // loop_header_branch
      %27 = sbr.rel (%p25) target = $region8
    $region5: #{tpu_custom_call.1} parent=1 // loop_body
      %s29 = ssub.s32 %s24, 1
      %s30 = ssub.s32 %s24, 2
      %s31 = sadd.s32 %s24, 1
      %s32 = ssub.s32 %s24, %s31
      %p33 = scmp.eq.s32.totalorder %s32, 0
      %s35 = sadd.s32 %s34, 1
      %s36 = scalar_select %p33, %s34, %s35
      %p39 = pneg %p33
      %p40 = scmp.eq.s32.totalorder %s24, 1
      %p41 = por %p39, %p40
      %p42 = scmp.ne.s32.totalorder %s34, %s37
      %p43 = scmp.eq.s32.totalorder %s24, 0
      %p44 = por %p42, %p43
      %p45 = scmp.ne.s32.totalorder %s34, %s37
      %p46 = scmp.eq.s32.totalorder %s29, 1
      %p47 = por %p45, %p46
      %p48 = scmp.ne.s32.totalorder %s37, %s38
      %p49 = scmp.eq.s32.totalorder %s29, 0
      %p50 = por %p48, %p49
      %p51 = scmp.ne.s32.totalorder %s37, %s38
      %p52 = scmp.eq.s32.totalorder %s30, 1
      %p53 = por %p51, %p52
      %p55 = scmp.ne.s32.totalorder %s38, %s54
      %p56 = scmp.eq.s32.totalorder %s30, 0
      %p57 = por %p55, %p56
      %s59 = sadd.s32 %s58, 1
      %p62 = scmp.eq.s32.totalorder %s24, 1
      %p63 = scmp.ne.s32.totalorder %s58, %s60
      %p64 = scmp.eq.s32.totalorder %s24, 0
      %p65 = por %p63, %p64
      %p66 = scmp.ne.s32.totalorder %s58, %s60
      %p67 = scmp.eq.s32.totalorder %s29, 1
      %p68 = por %p66, %p67
      %p69 = scmp.ne.s32.totalorder %s60, %s61
      %p70 = scmp.eq.s32.totalorder %s29, 0
      %p71 = por %p69, %p70
      %p72 = scmp.ne.s32.totalorder %s60, %s61
      %p73 = scmp.eq.s32.totalorder %s30, 1
      %p74 = por %p72, %p73
      %p76 = scmp.ne.s32.totalorder %s61, %s75
      %p77 = scmp.eq.s32.totalorder %s30, 0
      %p78 = por %p76, %p77
      %s80 = sadd.s32 %s79, 1
      %p83 = scmp.eq.s32.totalorder %s24, 1
      %p84 = scmp.ne.s32.totalorder %s79, %s81
      %p85 = scmp.eq.s32.totalorder %s24, 0
      %p86 = por %p84, %p85
      %p87 = scmp.ne.s32.totalorder %s79, %s81
      %p88 = scmp.eq.s32.totalorder %s29, 1
      %p89 = por %p87, %p88
      %p90 = scmp.ne.s32.totalorder %s81, %s82
      %p91 = scmp.eq.s32.totalorder %s29, 0
      %p92 = por %p90, %p91
      %p93 = scmp.ne.s32.totalorder %s81, %s82
      %p94 = scmp.eq.s32.totalorder %s30, 1
      %p95 = por %p93, %p94
      %p97 = scmp.ne.s32.totalorder %s82, %s96
      %p98 = scmp.eq.s32.totalorder %s30, 0
      %p99 = por %p97, %p98
      %s101 = sadd.s32 %s100, 1
      %p104 = scmp.eq.s32.totalorder %s24, 1
      %p105 = scmp.ne.s32.totalorder %s100, %s102
      %p106 = scmp.eq.s32.totalorder %s24, 0
      %p107 = por %p105, %p106
      %p108 = scmp.ne.s32.totalorder %s100, %s102
      %p109 = scmp.eq.s32.totalorder %s29, 1
      %p110 = por %p108, %p109
      %p111 = scmp.ne.s32.totalorder %s102, %s103
      %p112 = scmp.eq.s32.totalorder %s29, 0
      %p113 = por %p111, %p112
      %p114 = scmp.ne.s32.totalorder %s102, %s103
      %p115 = scmp.eq.s32.totalorder %s30, 1
      %p116 = por %p114, %p115
      %p118 = scmp.ne.s32.totalorder %s103, %s117
      %p119 = scmp.eq.s32.totalorder %s30, 0
      %p120 = por %p118, %p119
      %s121 = ssub.s32 %s24, %s31
      %p122 = scmp.eq.s32.totalorder %s121, 0
      %s124 = sadd.s32 %s123, 1
      %s125 = scalar_select %p122, %s123, %s124
      %p128 = pneg %p122
      %p129 = scmp.eq.s32.totalorder %s24, 1
      %p130 = por %p128, %p129
      %p131 = scmp.ne.s32.totalorder %s123, %s126
      %p132 = scmp.eq.s32.totalorder %s24, 0
      %p133 = por %p131, %p132
      %p134 = scmp.ne.s32.totalorder %s123, %s126
      %p135 = scmp.eq.s32.totalorder %s29, 1
      %p136 = por %p134, %p135
      %p137 = scmp.ne.s32.totalorder %s126, %s127
      %p138 = scmp.eq.s32.totalorder %s29, 0
      %p139 = por %p137, %p138
      %p140 = scmp.ne.s32.totalorder %s126, %s127
      %p141 = scmp.eq.s32.totalorder %s30, 1
      %p142 = por %p140, %p141
      %p144 = scmp.ne.s32.totalorder %s127, %s143
      %p145 = scmp.eq.s32.totalorder %s30, 0
      %p146 = por %p144, %p145
      %s147 = ssub.s32 %s24, %s31
      %p148 = scmp.eq.s32.totalorder %s147, 0
      %s150 = sadd.s32 %s149, 1
      %s151 = scalar_select %p148, %s149, %s150
      %p154 = pneg %p148
      %p155 = scmp.eq.s32.totalorder %s24, 1
      %p156 = por %p154, %p155
      %p157 = scmp.ne.s32.totalorder %s149, %s152
      %p158 = scmp.eq.s32.totalorder %s24, 0
      %p159 = por %p157, %p158
      %p160 = scmp.ne.s32.totalorder %s149, %s152
      %p161 = scmp.eq.s32.totalorder %s29, 1
      %p162 = por %p160, %p161
      %p163 = scmp.ne.s32.totalorder %s152, %s153
      %p164 = scmp.eq.s32.totalorder %s29, 0
      %p165 = por %p163, %p164
      %p166 = scmp.ne.s32.totalorder %s152, %s153
      %p167 = scmp.eq.s32.totalorder %s30, 1
      %p168 = por %p166, %p167
      %p170 = scmp.ne.s32.totalorder %s153, %s169
      %p171 = scmp.eq.s32.totalorder %s30, 0
      %p172 = por %p170, %p171
      %s173 = ssub.s32 %s24, %s31
      %p174 = scmp.eq.s32.totalorder %s173, 0
      %s176 = sadd.s32 %s175, 1
      %s177 = scalar_select %p174, %s175, %s176
      %p180 = pneg %p174
      %p181 = scmp.eq.s32.totalorder %s24, 1
      %p182 = por %p180, %p181
      %p183 = scmp.ne.s32.totalorder %s175, %s178
      %p184 = scmp.eq.s32.totalorder %s24, 0
      %p185 = por %p183, %p184
      %p186 = scmp.ne.s32.totalorder %s175, %s178
      %p187 = scmp.eq.s32.totalorder %s29, 1
      %p188 = por %p186, %p187
      %p189 = scmp.ne.s32.totalorder %s178, %s179
      %p190 = scmp.eq.s32.totalorder %s29, 0
      %p191 = por %p189, %p190
      %p192 = scmp.ne.s32.totalorder %s178, %s179
      %p193 = scmp.eq.s32.totalorder %s30, 1
      %p194 = por %p192, %p193
      %p196 = scmp.ne.s32.totalorder %s179, %s195
      %p197 = scmp.eq.s32.totalorder %s30, 0
      %p198 = por %p196, %p197
      %p199 = scmp.le.s32.totalorder 1, %s24
      %p200 = scmp.lt.s32.totalorder %s24, 3
      %p201 = pnand %p199, %p200
      %p202 = pneg %p201
      // Predicated region
      $region9: #{tpu_custom_call.1} parent=5 // pred_check
        _
      $region10: #{tpu_custom_call.1} parent=5 // pred_check_branch
        %204 = sbr.rel (%p201) target = $region12
      $region11: #{tpu_custom_call.1} parent=5 // pred_region
        %s205 = ssub.s32 %s24, 1
        // Predicated region
        $region13: #{tpu_custom_call.1} parent=11 // pred_check
          %p206 = pneg %p71
        $region14: #{tpu_custom_call.1} parent=11 // pred_check_branch
          %208 = sbr.rel (%p206) target = $region16
        $region15: #{tpu_custom_call.1} parent=11 // pred_region
          %s210 = ssub.s32 4096, 4096
          %211 = vsyncadd [#allocation6], %s210
          %s212 = sshll.u32 [#allocation5], 4
          %s213 = int_to_ptr.vmem [resolvable:$true] %s212
          %218 = dma.hbm_to_vmem [thread:$0]  %s1, 4096, %s213, [#allocation6], 128, 128, 8
        $region16: #{tpu_custom_call.1} parent=11 // pred_fallthru
          _
        // Predicated region
        $region17: #{tpu_custom_call.1} parent=11 // pred_check
          %p219 = pneg %p92
        $region18: #{tpu_custom_call.1} parent=11 // pred_check_branch
          %221 = sbr.rel (%p219) target = $region20
        $region19: #{tpu_custom_call.1} parent=11 // pred_region
          %s223 = ssub.s32 16, 16
          %224 = vsyncadd [#allocation6], %s223
          %s226 = sshll.u32 [#allocation7], 4
          %s227 = int_to_ptr.vmem [resolvable:$true] %s226
          %229 = dma.hbm_to_vmem [thread:$0]  %s2, 16, %s227, [#allocation6]
        $region20: #{tpu_custom_call.1} parent=11 // pred_fallthru
          _
        // Predicated region
        $region21: #{tpu_custom_call.1} parent=11 // pred_check
          %p230 = pneg %p113
        $region22: #{tpu_custom_call.1} parent=11 // pred_check_branch
          %232 = sbr.rel (%p230) target = $region24
        $region23: #{tpu_custom_call.1} parent=11 // pred_region
          %s234 = ssub.s32 16, 16
          %235 = vsyncadd [#allocation9], %s234
          %s237 = sshll.u32 [#allocation8], 4
          %s238 = int_to_ptr.vmem [resolvable:$true] %s237
          %240 = dma.hbm_to_vmem [thread:$0]  %s3, 16, %s238, [#allocation9]
        $region24: #{tpu_custom_call.1} parent=11 // pred_fallthru
          _
      $region12: #{tpu_custom_call.1} parent=5 // pred_fallthru
        _
      %p241 = scmp.lt.s32.totalorder %s24, 2
      // Predicated region
      $region25: #{tpu_custom_call.1} parent=5 // pred_check
        %p242 = pneg %p241
      $region26: #{tpu_custom_call.1} parent=5 // pred_check_branch
        %244 = sbr.rel (%p242) target = $region28
      $region27: #{tpu_custom_call.1} parent=5 // pred_region
        // Predicated region
        $region29: #{tpu_custom_call.1} parent=27 // pred_check
          %p245 = pneg %p44
        $region30: #{tpu_custom_call.1} parent=27 // pred_check_branch
          %247 = sbr.rel (%p245) target = $region32
        $region31: #{tpu_custom_call.1} parent=27 // pred_region
          %s248 = sand.u32 %s24, 1
          %s249 = scalar_lea.sflag [#allocation3], %s248
          %s250 = sand.u32 %s34, 1
          %s251 = smul.addr %s250, 256
          %s252 = scalar_lea.vmem [#allocation2], %s251
          %s253 = smul.u32 16, %s24
          %s255 = ssub.s32 4096, 4096
          %256 = vsyncadd %s249, %s255
          %s257 = smul.addr %s253, 2
          %s258 = smul.addr %s257, 128
          %s259 = scalar_lea.hbm %s0, %s258
          %s260 = sshll.u32 %s252, 4
          %s261 = int_to_ptr.vmem [resolvable:$true] %s260
          %266 = dma.hbm_to_vmem [thread:$0]  %s259, 4096, %s261, %s249, 256, 256, 16
        $region32: #{tpu_custom_call.1} parent=27 // pred_fallthru
          _
        // Predicated region
        $region33: #{tpu_custom_call.1} parent=27 // pred_check
          %p267 = pneg %p133
        $region34: #{tpu_custom_call.1} parent=27 // pred_check_branch
          %269 = sbr.rel (%p267) target = $region36
        $region35: #{tpu_custom_call.1} parent=27 // pred_region
          %s270 = sand.u32 %s24, 1
          %s271 = scalar_lea.sflag [#allocation3], %s270
          %s272 = sand.u32 %s123, 1
          %s273 = smul.addr %s272, 8
          %s274 = scalar_lea.vmem [#allocation10], %s273
          %s276 = ssub.s32 128, 128
          %277 = vsyncadd %s271, %s276
          %s278 = smul.addr %s24, 128
          %s279 = scalar_lea.hbm %s4, %s278
          %s281 = sshll.u32 %s274, 4
          %s282 = int_to_ptr.vmem [resolvable:$true] %s281
          %284 = dma.hbm_to_vmem [thread:$0]  %s279, 128, %s282, %s271
        $region36: #{tpu_custom_call.1} parent=27 // pred_fallthru
          _
      $region28: #{tpu_custom_call.1} parent=5 // pred_fallthru
        _
      %p285 = scmp.le.s32.totalorder 1, %s24
      %p286 = scmp.lt.s32.totalorder %s24, 3
      %p287 = pnand %p285, %p286
      %p288 = pneg %p287
      // Predicated region
      $region37: #{tpu_custom_call.1} parent=5 // pred_check
        _
      $region38: #{tpu_custom_call.1} parent=5 // pred_check_branch
        %290 = sbr.rel (%p287) target = $region40
      $region39: #{tpu_custom_call.1} parent=5 // pred_region
        %s291 = ssub.s32 %s24, 1
        %s292 = sand.u32 %s29, 1
        %s293 = scalar_lea.sflag [#allocation3], %s292
        %s294 = sand.u32 %s37, 1
        %s295 = smul.addr %s294, 256
        %s296 = scalar_lea.vmem [#allocation2], %s295
        // Predicated region
        $region41: #{tpu_custom_call.1} parent=39 // pred_check
          %p297 = pneg %p50
        $region42: #{tpu_custom_call.1} parent=39 // pred_check_branch
          %299 = sbr.rel (%p297) target = $region44
        $region43: #{tpu_custom_call.1} parent=39 // pred_region
          %300 = dma.done %s293, 4096
        $region44: #{tpu_custom_call.1} parent=39 // pred_fallthru
          _
        // Predicated region
        $region45: #{tpu_custom_call.1} parent=39 // pred_check
          %p301 = pneg %p71
        $region46: #{tpu_custom_call.1} parent=39 // pred_check_branch
          %303 = sbr.rel (%p301) target = $region48
        $region47: #{tpu_custom_call.1} parent=39 // pred_region
          %304 = dma.done [#allocation6], 4096
        $region48: #{tpu_custom_call.1} parent=39 // pred_fallthru
          _
        // Predicated region
        $region49: #{tpu_custom_call.1} parent=39 // pred_check
          %p305 = pneg %p92
        $region50: #{tpu_custom_call.1} parent=39 // pred_check_branch
          %307 = sbr.rel (%p305) target = $region52
        $region51: #{tpu_custom_call.1} parent=39 // pred_region
          %308 = dma.done [#allocation6], 16
        $region52: #{tpu_custom_call.1} parent=39 // pred_fallthru
          _
        // Predicated region
        $region53: #{tpu_custom_call.1} parent=39 // pred_check
          %p309 = pneg %p113
        $region54: #{tpu_custom_call.1} parent=39 // pred_check_branch
          %311 = sbr.rel (%p309) target = $region56
        $region55: #{tpu_custom_call.1} parent=39 // pred_region
          %312 = dma.done [#allocation9], 16
        $region56: #{tpu_custom_call.1} parent=39 // pred_fallthru
          _
        %s313 = sand.u32 %s29, 1
        %s314 = scalar_lea.sflag [#allocation3], %s313
        %s315 = sand.u32 %s126, 1
        %s316 = smul.addr %s315, 8
        %s317 = scalar_lea.vmem [#allocation10], %s316
        // Predicated region
        $region57: #{tpu_custom_call.1} parent=39 // pred_check
          %p318 = pneg %p139
        $region58: #{tpu_custom_call.1} parent=39 // pred_check_branch
          %320 = sbr.rel (%p318) target = $region60
        $region59: #{tpu_custom_call.1} parent=39 // pred_region
          %321 = dma.done %s314, 128
        $region60: #{tpu_custom_call.1} parent=39 // pred_fallthru
          _
        %s322 = sand.u32 %s29, 1
        %s323 = scalar_lea.sflag [#allocation3], %s322
        %s324 = sand.u32 %s37, 1
        %s325 = smul.addr %s324, 256
        %s326 = scalar_lea.vmem [#allocation2], %s325
        %p327 = pneg %p50
        %p328 = pneg %p47
        %p329 = pneg %p71
        %p330 = pneg %p68
        %p331 = pneg %p92
        %p332 = pneg %p89
        %p333 = pneg %p113
        %p334 = pneg %p110
        %s335 = sand.u32 %s29, 1
        %s336 = scalar_lea.sflag [#allocation3], %s335
        %s337 = sand.u32 %s126, 1
        %s338 = smul.addr %s337, 8
        %s339 = scalar_lea.vmem [#allocation10], %s338
        %p340 = pneg %p139
        %p341 = pneg %p136
        %p342 = pneg %p165
        %p343 = pneg %p162
        %s344 = sand.u32 %s152, 1
        %s345 = scalar_lea.sflag [#allocation4], %s344
        %s346 = sand.u32 %s152, 1
        %s347 = smul.addr %s346, 128
        %s348 = scalar_lea.vmem [#allocation11], %s347
        %p349 = pneg %p191
        %p350 = pneg %p188
        %s351 = sand.u32 %s178, 1
        %s352 = scalar_lea.sflag [#allocation13], %s351
        %s353 = sand.u32 %s178, 1
        %s354 = smul.addr %s353, 8
        %s355 = scalar_lea.vmem [#allocation12], %s354
        %s356 = smul.u32 16, %s29
        %s357 = smul.u32 16, %s29
        %v358 = vld [vmem:[%s296] sm:$0xff]
        %v359 = vld [vmem:[%s296 + $0x8] sm:$0xff]
        %v360 = vld [vmem:[%s296 + $0x10] sm:$0xff]
        %v361 = vld [vmem:[%s296 + $0x18] sm:$0xff]
        %v362 = vld [vmem:[%s296 + $0x20] sm:$0xff]
        %v363 = vld [vmem:[%s296 + $0x28] sm:$0xff]
        %v364 = vld [vmem:[%s296 + $0x30] sm:$0xff]
        %v365 = vld [vmem:[%s296 + $0x38] sm:$0xff]
        %v366 = vld [vmem:[%s296 + $0x40] sm:$0xff]
        %v367 = vld [vmem:[%s296 + $0x48] sm:$0xff]
        %v368 = vld [vmem:[%s296 + $0x50] sm:$0xff]
        %v369 = vld [vmem:[%s296 + $0x58] sm:$0xff]
        %v370 = vld [vmem:[%s296 + $0x60] sm:$0xff]
        %v371 = vld [vmem:[%s296 + $0x68] sm:$0xff]
        %v372 = vld [vmem:[%s296 + $0x70] sm:$0xff]
        %v373 = vld [vmem:[%s296 + $0x78] sm:$0xff]
        %v374 = vld [vmem:[%s296 + $0x80] sm:$0xff]
        %v375 = vld [vmem:[%s296 + $0x88] sm:$0xff]
        %v376 = vld [vmem:[%s296 + $0x90] sm:$0xff]
        %v377 = vld [vmem:[%s296 + $0x98] sm:$0xff]
        %v378 = vld [vmem:[%s296 + $0xa0] sm:$0xff]
        %v379 = vld [vmem:[%s296 + $0xa8] sm:$0xff]
        %v380 = vld [vmem:[%s296 + $0xb0] sm:$0xff]
        %v381 = vld [vmem:[%s296 + $0xb8] sm:$0xff]
        %v382 = vld [vmem:[%s296 + $0xc0] sm:$0xff]
        %v383 = vld [vmem:[%s296 + $0xc8] sm:$0xff]
        %v384 = vld [vmem:[%s296 + $0xd0] sm:$0xff]
        %v385 = vld [vmem:[%s296 + $0xd8] sm:$0xff]
        %v386 = vld [vmem:[%s296 + $0xe0] sm:$0xff]
        %v387 = vld [vmem:[%s296 + $0xe8] sm:$0xff]
        %v388 = vld [vmem:[%s296 + $0xf0] sm:$0xff]
        %v389 = vld [vmem:[%s296 + $0xf8] sm:$0xff]
        %v390 = vld [vmem:[#allocation5] sm:$0xff]
        %v391 = vld [vmem:[#allocation5 + $0x8] sm:$0xff]
        %v392 = vld [vmem:[#allocation5 + $0x10] sm:$0xff]
        %v393 = vld [vmem:[#allocation5 + $0x18] sm:$0xff]
        %v394 = vld [vmem:[#allocation5 + $0x20] sm:$0xff]
        %v395 = vld [vmem:[#allocation5 + $0x28] sm:$0xff]
        %v396 = vld [vmem:[#allocation5 + $0x30] sm:$0xff]
        %v397 = vld [vmem:[#allocation5 + $0x38] sm:$0xff]
        %v398 = vld [vmem:[#allocation5 + $0x40] sm:$0xff]
        %v399 = vld [vmem:[#allocation5 + $0x48] sm:$0xff]
        %v400 = vld [vmem:[#allocation5 + $0x50] sm:$0xff]
        %v401 = vld [vmem:[#allocation5 + $0x58] sm:$0xff]
        %v402 = vld [vmem:[#allocation5 + $0x60] sm:$0xff]
        %v403 = vld [vmem:[#allocation5 + $0x68] sm:$0xff]
        %v404 = vld [vmem:[#allocation5 + $0x70] sm:$0xff]
        %v405 = vld [vmem:[#allocation5 + $0x78] sm:$0xff]
        %v406 = vld [vmem:[#allocation5 + $0x80] sm:$0xff]
        %v407 = vld [vmem:[#allocation5 + $0x88] sm:$0xff]
        %v408 = vld [vmem:[#allocation5 + $0x90] sm:$0xff]
        %v409 = vld [vmem:[#allocation5 + $0x98] sm:$0xff]
        %v410 = vld [vmem:[#allocation5 + $0xa0] sm:$0xff]
        %v411 = vld [vmem:[#allocation5 + $0xa8] sm:$0xff]
        %v412 = vld [vmem:[#allocation5 + $0xb0] sm:$0xff]
        %v413 = vld [vmem:[#allocation5 + $0xb8] sm:$0xff]
        %v414 = vld [vmem:[#allocation5 + $0xc0] sm:$0xff]
        %v415 = vld [vmem:[#allocation5 + $0xc8] sm:$0xff]
        %v416 = vld [vmem:[#allocation5 + $0xd0] sm:$0xff]
        %v417 = vld [vmem:[#allocation5 + $0xd8] sm:$0xff]
        %v418 = vld [vmem:[#allocation5 + $0xe0] sm:$0xff]
        %v419 = vld [vmem:[#allocation5 + $0xe8] sm:$0xff]
        %v420 = vld [vmem:[#allocation5 + $0xf0] sm:$0xff]
        %v421 = vld [vmem:[#allocation5 + $0xf8] sm:$0xff]
        %v422 = vld [vmem:[#allocation7] sm:$0x1]
        %v424 = vlaneseq
        %v425 = vshrl.u32 %v424, 7
        %v426 = vsub.s32 0, %v425
        %v427 = vrot.slane %v422, %v426
        %429 = vmatprep.subr.mxu0 0.0
        %430 = vmatpush1.msra.mxu0 %v390
        %431 = vmatprep.subr.mxu0 0.0
        %432 = vmatpush1.msra.mxu0 %v391
        %433 = vmatprep.subr.mxu0 0.0
        %434 = vmatpush1.msra.mxu0 %v392
        %435 = vmatprep.subr.mxu0 0.0
        %436 = vmatpush1.msra.mxu0 %v393
        %437 = vmatprep.subr.mxu0 0.0
        %438 = vmatpush1.msra.mxu0 %v394
        %439 = vmatprep.subr.mxu0 0.0
        %440 = vmatpush1.msra.mxu0 %v395
        %441 = vmatprep.subr.mxu0 0.0
        %442 = vmatpush1.msra.mxu0 %v396
        %443 = vmatprep.subr.mxu0 0.0
        %444 = vmatpush1.msra.mxu0 %v397
        %445 = vmatprep.subr.mxu0 0.0
        %446 = vmatpush1.msra.mxu0 %v398
        %447 = vmatprep.subr.mxu0 0.0
        %448 = vmatpush1.msra.mxu0 %v399
        %449 = vmatprep.subr.mxu0 0.0
        %450 = vmatpush1.msra.mxu0 %v400
        %451 = vmatprep.subr.mxu0 0.0
        %452 = vmatpush1.msra.mxu0 %v401
        %453 = vmatprep.subr.mxu0 0.0
        %454 = vmatpush1.msra.mxu0 %v402
        %455 = vmatprep.subr.mxu0 0.0
        %456 = vmatpush1.msra.mxu0 %v403
        %457 = vmatprep.subr.mxu0 0.0
        %458 = vmatpush1.msra.mxu0 %v404
        %459 = vmatprep.subr.mxu0 0.0
        %460 = vmatpush1.msra.mxu0 %v405
        %461 = vmatprep.subr.mxu0 0.0
        %462 = vmatpush1.msra.mxu0 %v406
        %463 = vmatprep.subr.mxu0 0.0
        %464 = vmatpush1.msra.mxu0 %v407
        %465 = vmatprep.subr.mxu0 0.0
        %466 = vmatpush1.msra.mxu0 %v408
        %467 = vmatprep.subr.mxu0 0.0
        %468 = vmatpush1.msra.mxu0 %v409
        %469 = vmatprep.subr.mxu0 0.0
        %470 = vmatpush1.msra.mxu0 %v410
        %471 = vmatprep.subr.mxu0 0.0
        %472 = vmatpush1.msra.mxu0 %v411
        %473 = vmatprep.subr.mxu0 0.0
        %474 = vmatpush1.msra.mxu0 %v412
        %475 = vmatprep.subr.mxu0 0.0
        %476 = vmatpush1.msra.mxu0 %v413
        %477 = vmatprep.subr.mxu0 0.0
        %478 = vmatpush1.msra.mxu0 %v414
        %479 = vmatprep.subr.mxu0 0.0
        %480 = vmatpush1.msra.mxu0 %v415
        %481 = vmatprep.subr.mxu0 0.0
        %482 = vmatpush1.msra.mxu0 %v416
        %483 = vmatprep.subr.mxu0 0.0
        %484 = vmatpush1.msra.mxu0 %v417
        %485 = vmatprep.subr.mxu0 0.0
        %486 = vmatpush1.msra.mxu0 %v418
        %487 = vmatprep.subr.mxu0 0.0
        %488 = vmatpush1.msra.mxu0 %v419
        %489 = vmatprep.subr.mxu0 0.0
        %490 = vmatpush1.msra.mxu0 %v420
        %491 = vmatprep.subr.mxu0 0.0
        %492 = vmatpush1.msra.mxu0 %v421
        %493 = vmatprep.mubr.f32.mxu0 %v359
        %494 = vmatmul.mubr.f32.gmra.mrb[0].mxu0 %v358
        %v495 = vpop.f32.mrb[0].mxu0
        %v496 = vadd.f32 %v427, %v495
        %v497 = vpop.f32.mrb[0].mxu0
        %498 = vmatprep.mubr.f32.mxu0 %v361
        %499 = vmatmul.mubr.f32.gmra.mrb[0].mxu0 %v360
        %v500 = vpop.f32.mrb[0].mxu0
        %v501 = vadd.f32 %v427, %v500
        %v502 = vpop.f32.mrb[0].mxu0
        %503 = vmatprep.mubr.f32.mxu0 %v363
        %504 = vmatmul.mubr.f32.gmra.mrb[0].mxu0 %v362
        %v505 = vpop.f32.mrb[0].mxu0
        %v506 = vadd.f32 %v427, %v505
        %v507 = vpop.f32.mrb[0].mxu0
        %508 = vmatprep.mubr.f32.mxu0 %v365
        %509 = vmatmul.mubr.f32.gmra.mrb[0].mxu0 %v364
        %v510 = vpop.f32.mrb[0].mxu0
        %v511 = vadd.f32 %v427, %v510
        %v512 = vpop.f32.mrb[0].mxu0
        %513 = vmatprep.mubr.f32.mxu0 %v367
        %514 = vmatmul.mubr.f32.gmra.mrb[0].mxu0 %v366
        %v515 = vpop.f32.mrb[0].mxu0
        %v516 = vadd.f32 %v427, %v515
        %v517 = vpop.f32.mrb[0].mxu0
        %518 = vmatprep.mubr.f32.mxu0 %v369
        %519 = vmatmul.mubr.f32.gmra.mrb[0].mxu0 %v368
        %v520 = vpop.f32.mrb[0].mxu0
        %v521 = vadd.f32 %v427, %v520
        %v522 = vpop.f32.mrb[0].mxu0
        %523 = vmatprep.mubr.f32.mxu0 %v371
        %524 = vmatmul.mubr.f32.gmra.mrb[0].mxu0 %v370
        %v525 = vpop.f32.mrb[0].mxu0
        %v526 = vadd.f32 %v427, %v525
        %v527 = vpop.f32.mrb[0].mxu0
        %528 = vmatprep.mubr.f32.mxu0 %v373
        %529 = vmatmul.mubr.f32.gmra.mrb[0].mxu0 %v372
        %v530 = vpop.f32.mrb[0].mxu0
        %v531 = vadd.f32 %v427, %v530
        %v532 = vpop.f32.mrb[0].mxu0
        %533 = vmatprep.mubr.f32.mxu0 %v375
        %534 = vmatmul.mubr.f32.gmra.mrb[0].mxu0 %v374
        %v535 = vpop.f32.mrb[0].mxu0
        %v536 = vadd.f32 %v427, %v535
        %v537 = vpop.f32.mrb[0].mxu0
        %538 = vmatprep.mubr.f32.mxu0 %v377
        %539 = vmatmul.mubr.f32.gmra.mrb[0].mxu0 %v376
        %v540 = vpop.f32.mrb[0].mxu0
        %v541 = vadd.f32 %v427, %v540
        %v542 = vpop.f32.mrb[0].mxu0
        %543 = vmatprep.mubr.f32.mxu0 %v379
        %544 = vmatmul.mubr.f32.gmra.mrb[0].mxu0 %v378
        %v545 = vpop.f32.mrb[0].mxu0
        %v546 = vadd.f32 %v427, %v545
        %v547 = vpop.f32.mrb[0].mxu0
        %548 = vmatprep.mubr.f32.mxu0 %v381
        %549 = vmatmul.mubr.f32.gmra.mrb[0].mxu0 %v380
        %v550 = vpop.f32.mrb[0].mxu0
        %v551 = vadd.f32 %v427, %v550
        %v552 = vpop.f32.mrb[0].mxu0
        %553 = vmatprep.mubr.f32.mxu0 %v383
        %554 = vmatmul.mubr.f32.gmra.mrb[0].mxu0 %v382
        %v555 = vpop.f32.mrb[0].mxu0
        %v556 = vadd.f32 %v427, %v555
        %v557 = vpop.f32.mrb[0].mxu0
        %558 = vmatprep.mubr.f32.mxu0 %v385
        %559 = vmatmul.mubr.f32.gmra.mrb[0].mxu0 %v384
        %v560 = vpop.f32.mrb[0].mxu0
        %v561 = vadd.f32 %v427, %v560
        %v562 = vpop.f32.mrb[0].mxu0
        %563 = vmatprep.mubr.f32.mxu0 %v387
        %564 = vmatmul.mubr.f32.gmra.mrb[0].mxu0 %v386
        %v565 = vpop.f32.mrb[0].mxu0
        %v566 = vadd.f32 %v427, %v565
        %v567 = vpop.f32.mrb[0].mxu0
        %568 = vmatprep.mubr.f32.mxu0 %v389
        %569 = vmatmul.mubr.f32.gmra.mrb[0].mxu0 %v388
        %v570 = vpop.f32.mrb[0].mxu0
        %v571 = vadd.f32 %v427, %v570
        %v572 = vpop.f32.mrb[0].mxu0
        %573 = vdwg.mxu0
        %vm574 = vcmp.gt.f32.partialorder %v496, 0.0
        %vm575 = vcmp.gt.f32.partialorder %v501, 0.0
        %vm576 = vcmp.gt.f32.partialorder %v506, 0.0
        %vm577 = vcmp.gt.f32.partialorder %v511, 0.0
        %vm578 = vcmp.gt.f32.partialorder %v516, 0.0
        %vm579 = vcmp.gt.f32.partialorder %v521, 0.0
        %vm580 = vcmp.gt.f32.partialorder %v526, 0.0
        %vm581 = vcmp.gt.f32.partialorder %v531, 0.0
        %vm582 = vcmp.gt.f32.partialorder %v536, 0.0
        %vm583 = vcmp.gt.f32.partialorder %v541, 0.0
        %vm584 = vcmp.gt.f32.partialorder %v546, 0.0
        %vm585 = vcmp.gt.f32.partialorder %v551, 0.0
        %vm586 = vcmp.gt.f32.partialorder %v556, 0.0
        %vm587 = vcmp.gt.f32.partialorder %v561, 0.0
        %vm588 = vcmp.gt.f32.partialorder %v566, 0.0
        %vm589 = vcmp.gt.f32.partialorder %v571, 0.0
        %v590 = vld [vmem:[#allocation8] sm:$0x1]
        %v592 = vlaneseq
        %v593 = vshrl.u32 %v592, 7
        %v594 = vsub.s32 0, %v593
        %v595 = vrot.slane %v590, %v594
        %v597 = vmul.f32 %v595, %v496
        %v598 = vmul.f32 %v595, %v501
        %v599 = vmul.f32 %v595, %v506
        %v600 = vmul.f32 %v595, %v511
        %v601 = vmul.f32 %v595, %v516
        %v602 = vmul.f32 %v595, %v521
        %v603 = vmul.f32 %v595, %v526
        %v604 = vmul.f32 %v595, %v531
        %v605 = vmul.f32 %v595, %v536
        %v606 = vmul.f32 %v595, %v541
        %v607 = vmul.f32 %v595, %v546
        %v608 = vmul.f32 %v595, %v551
        %v609 = vmul.f32 %v595, %v556
        %v610 = vmul.f32 %v595, %v561
        %v611 = vmul.f32 %v595, %v566
        %v612 = vmul.f32 %v595, %v571
        %v613 = vsel %vm574, %v496, %v597
        %v614 = vsel %vm575, %v501, %v598
        %v615 = vsel %vm576, %v506, %v599
        %v616 = vsel %vm577, %v511, %v600
        %v617 = vsel %vm578, %v516, %v601
        %v618 = vsel %vm579, %v521, %v602
        %v619 = vsel %vm580, %v526, %v603
        %v620 = vsel %vm581, %v531, %v604
        %v621 = vsel %vm582, %v536, %v605
        %v622 = vsel %vm583, %v541, %v606
        %v623 = vsel %vm584, %v546, %v607
        %v624 = vsel %vm585, %v551, %v608
        %v625 = vsel %vm586, %v556, %v609
        %v626 = vsel %vm587, %v561, %v610
        %v627 = vsel %vm588, %v566, %v611
        %v628 = vsel %vm589, %v571, %v612
        %vm629 = vcmask 523264
        %630 = vst.msk [vmem:[%s348] sm:$0xff] %vm629, %v613
        %631 = vst.msk [vmem:[%s348 + $0x8] sm:$0xff] %vm629, %v614
        %632 = vst.msk [vmem:[%s348 + $0x10] sm:$0xff] %vm629, %v615
        %633 = vst.msk [vmem:[%s348 + $0x18] sm:$0xff] %vm629, %v616
        %634 = vst.msk [vmem:[%s348 + $0x20] sm:$0xff] %vm629, %v617
        %635 = vst.msk [vmem:[%s348 + $0x28] sm:$0xff] %vm629, %v618
        %636 = vst.msk [vmem:[%s348 + $0x30] sm:$0xff] %vm629, %v619
        %637 = vst.msk [vmem:[%s348 + $0x38] sm:$0xff] %vm629, %v620
        %638 = vst.msk [vmem:[%s348 + $0x40] sm:$0xff] %vm629, %v621
        %639 = vst.msk [vmem:[%s348 + $0x48] sm:$0xff] %vm629, %v622
        %640 = vst.msk [vmem:[%s348 + $0x50] sm:$0xff] %vm629, %v623
        %641 = vst.msk [vmem:[%s348 + $0x58] sm:$0xff] %vm629, %v624
        %642 = vst.msk [vmem:[%s348 + $0x60] sm:$0xff] %vm629, %v625
        %643 = vst.msk [vmem:[%s348 + $0x68] sm:$0xff] %vm629, %v626
        %644 = vst.msk [vmem:[%s348 + $0x70] sm:$0xff] %vm629, %v627
        %645 = vst.msk [vmem:[%s348 + $0x78] sm:$0xff] %vm629, %v628
        %v646 = vld [vmem:[%s317] sm:$0xff]
        %647 = vmatprep.subr.mxu0 0.0
        %648 = vmatpush1.msra.mxu0 %v613
        %649 = vmatprep.subr.mxu0 0.0
        %650 = vmatpush1.msra.mxu0 %v614
        %651 = vmatprep.subr.mxu0 0.0
        %652 = vmatpush1.msra.mxu0 %v615
        %653 = vmatprep.subr.mxu0 0.0
        %654 = vmatpush1.msra.mxu0 %v616
        %655 = vmatprep.subr.mxu0 0.0
        %656 = vmatpush1.msra.mxu0 %v617
        %657 = vmatprep.subr.mxu0 0.0
        %658 = vmatpush1.msra.mxu0 %v618
        %659 = vmatprep.subr.mxu0 0.0
        %660 = vmatpush1.msra.mxu0 %v619
        %661 = vmatprep.subr.mxu0 0.0
        %662 = vmatpush1.msra.mxu0 %v620
        %663 = vmatprep.subr.mxu0 0.0
        %664 = vmatpush1.msra.mxu0 %v621
        %665 = vmatprep.subr.mxu0 0.0
        %666 = vmatpush1.msra.mxu0 %v622
        %667 = vmatprep.subr.mxu0 0.0
        %668 = vmatpush1.msra.mxu0 %v623
        %669 = vmatprep.subr.mxu0 0.0
        %670 = vmatpush1.msra.mxu0 %v624
        %671 = vmatprep.subr.mxu0 0.0
        %672 = vmatpush1.msra.mxu0 %v625
        %673 = vmatprep.subr.mxu0 0.0
        %674 = vmatpush1.msra.mxu0 %v626
        %675 = vmatprep.subr.mxu0 0.0
        %676 = vmatpush1.msra.mxu0 %v627
        %677 = vmatprep.subr.mxu0 0.0
        %678 = vmatpush1.msra.mxu0 %v628
        %679 = vmatprep.subr.mxu0 0.0
        %680 = vmatpush1.msra.mxu0 0.0
        %681 = vmatprep.subr.mxu0 0.0
        %682 = vmatpush1.msra.mxu0 0.0
        %683 = vmatprep.subr.mxu0 0.0
        %684 = vmatpush1.msra.mxu0 0.0
        %685 = vmatprep.subr.mxu0 0.0
        %686 = vmatpush1.msra.mxu0 0.0
        %687 = vmatprep.subr.mxu0 0.0
        %688 = vmatpush1.msra.mxu0 0.0
        %689 = vmatprep.subr.mxu0 0.0
        %690 = vmatpush1.msra.mxu0 0.0
        %691 = vmatprep.subr.mxu0 0.0
        %692 = vmatpush1.msra.mxu0 0.0
        %693 = vmatprep.subr.mxu0 0.0
        %694 = vmatpush1.msra.mxu0 0.0
        %695 = vmatprep.subr.mxu0 0.0
        %696 = vmatpush1.msra.mxu0 0.0
        %697 = vmatprep.subr.mxu0 0.0
        %698 = vmatpush1.msra.mxu0 0.0
        %699 = vmatprep.subr.mxu0 0.0
        %700 = vmatpush1.msra.mxu0 0.0
        %701 = vmatprep.subr.mxu0 0.0
        %702 = vmatpush1.msra.mxu0 0.0
        %703 = vmatprep.subr.mxu0 0.0
        %704 = vmatpush1.msra.mxu0 0.0
        %705 = vmatprep.subr.mxu0 0.0
        %706 = vmatpush1.msra.mxu0 0.0
        %707 = vmatprep.subr.mxu0 0.0
        %708 = vmatpush1.msra.mxu0 0.0
        %709 = vmatprep.subr.mxu0 0.0
        %710 = vmatpush1.msra.mxu0 0.0
        %711 = vmatprep.mubr.f32.mxu0 0.0
        %712 = vmatmul.mubr.f32.gmra.mrb[0].mxu0 %v646
        %v713 = vpop.f32.mrb[0].mxu0
        %v714 = vadd.f32 0.0, %v713
        %v715 = vpop.f32.mrb[0].mxu0
        %716 = vdwg.mxu0
        %717 = vst.msk [vmem:[%s355] sm:$0xff] %vm629, %v714
        %s718 = sand.u32 %s152, 1
        %s719 = scalar_lea.sflag [#allocation4], %s718
        %s720 = sand.u32 %s152, 1
        %s721 = smul.addr %s720, 128
        %s722 = scalar_lea.vmem [#allocation11], %s721
        %s723 = sand.u32 %s178, 1
        %s724 = scalar_lea.sflag [#allocation13], %s723
        %s725 = sand.u32 %s178, 1
        %s726 = smul.addr %s725, 8
        %s727 = scalar_lea.vmem [#allocation12], %s726
        // Predicated region
        $region61: #{tpu_custom_call.1} parent=39 // pred_check
          %p728 = pneg %p162
        $region62: #{tpu_custom_call.1} parent=39 // pred_check_branch
          %730 = sbr.rel (%p728) target = $region64
        $region63: #{tpu_custom_call.1} parent=39 // pred_region
          %s731 = smul.u32 16, %s29
          %s733 = ssub.s32 2048, 2048
          %734 = vsyncadd %s719, %s733
          %s735 = smul.addr %s731, 128
          %s736 = scalar_lea.hbm %s5, %s735
          %s737 = sshll.u32 %s722, 4
          %s738 = int_to_ptr.vmem [resolvable:$true] %s737
          %743 = dma.vmem_to_hbm [thread:$0]  %s738, 2048, %s736, %s719, 128, 128, 8
        $region64: #{tpu_custom_call.1} parent=39 // pred_fallthru
          _
        // Predicated region
        $region65: #{tpu_custom_call.1} parent=39 // pred_check
          %p744 = pneg %p188
        $region66: #{tpu_custom_call.1} parent=39 // pred_check_branch
          %746 = sbr.rel (%p744) target = $region68
        $region67: #{tpu_custom_call.1} parent=39 // pred_region
          %s748 = ssub.s32 128, 128
          %749 = vsyncadd %s724, %s748
          %s750 = smul.addr %s29, 128
          %s751 = scalar_lea.hbm %s6, %s750
          %s753 = sshll.u32 %s727, 4
          %s754 = int_to_ptr.vmem [resolvable:$true] %s753
          %756 = dma.vmem_to_hbm [thread:$0]  %s754, 128, %s751, %s724
        $region68: #{tpu_custom_call.1} parent=39 // pred_fallthru
          _
      $region40: #{tpu_custom_call.1} parent=5 // pred_fallthru
        _
      %p757 = scmp.le.s32.totalorder 2, %s24
      // Predicated region
      $region69: #{tpu_custom_call.1} parent=5 // pred_check
        %p758 = pneg %p757
      $region70: #{tpu_custom_call.1} parent=5 // pred_check_branch
        %760 = sbr.rel (%p758) target = $region72
      $region71: #{tpu_custom_call.1} parent=5 // pred_region
        %s761 = ssub.s32 %s24, 2
        // Predicated region
        $region73: #{tpu_custom_call.1} parent=71 // pred_check
          %p762 = pneg %p168
        $region74: #{tpu_custom_call.1} parent=71 // pred_check_branch
          %764 = sbr.rel (%p762) target = $region76
        $region75: #{tpu_custom_call.1} parent=71 // pred_region
          %s765 = sand.u32 %s153, 1
          %s766 = scalar_lea.sflag [#allocation4], %s765
          %s767 = sand.u32 %s153, 1
          %s768 = smul.addr %s767, 128
          %s769 = scalar_lea.vmem [#allocation11], %s768
          %770 = dma.done %s766, 2048
        $region76: #{tpu_custom_call.1} parent=71 // pred_fallthru
          _
        // Predicated region
        $region77: #{tpu_custom_call.1} parent=71 // pred_check
          %p771 = pneg %p194
        $region78: #{tpu_custom_call.1} parent=71 // pred_check_branch
          %773 = sbr.rel (%p771) target = $region80
        $region79: #{tpu_custom_call.1} parent=71 // pred_region
          %s774 = sand.u32 %s179, 1
          %s775 = scalar_lea.sflag [#allocation13], %s774
          %s776 = sand.u32 %s179, 1
          %s777 = smul.addr %s776, 8
          %s778 = scalar_lea.vmem [#allocation12], %s777
          %779 = dma.done %s775, 128
        $region80: #{tpu_custom_call.1} parent=71 // pred_fallthru
          _
      $region72: #{tpu_custom_call.1} parent=5 // pred_fallthru
        _
    $region6: #{tpu_custom_call.1} parent=1 // loop_footer
      %s28 = sadd.s32 1, %s24
    $region7: #{tpu_custom_call.1} parent=1 // loop_footer_branch
      %23 = sbr.rel target = $region3
    $region8: #{tpu_custom_call.1} parent=1 // loop_exit
      _
    %780 = vsyncpa [#allocation3], 1
    %s781 = scalar_lea.sflag [#allocation3], 1
    %782 = vsyncpa %s781, 1
    %783 = vsyncpa [#allocation6], 1
    %784 = vsyncpa [#allocation9], 1
    %785 = vsyncpa [#allocation4], 1
    %s786 = scalar_lea.sflag [#allocation4], 1
    %787 = vsyncpa %s786, 1
    %788 = vsyncpa [#allocation13], 1
    %s789 = scalar_lea.sflag [#allocation13], 1
    %790 = vsyncpa %s789, 1

</llo_original>
